<compile_context>
chip_gen: v6e
topology: v6e:2x2x1
jax: 0.10.0
libtpu: 0.0.40
codegen_flags: <defaults>
</compile_context>

<pallas_src>
import math

import jax
import jax.numpy as jnp
from jax import lax
from jax.experimental import pallas as pl
from jax.experimental.pallas import tpu as pltpu

EPS = 1e-12  # matches torch.nn.functional.normalize default eps


def netvlad_kernel(xs_ref, w_ref, b_ref, c_ref, o_ref):
    # xs_ref: (C, Nb*L)   lane-dense slab of Nb batch elements
    # w_ref : (K, C)      1x1 conv weight
    # b_ref : (K, 1)      conv bias
    # c_ref : (K, C)      centroids
    # o_ref : (Nb, K, C)  vlad output (fully L2-normalized per element)
    nb, k, c = o_ref.shape
    l = xs_ref.shape[1] // nb

    xs = xs_ref[...].astype(jnp.float32)          # [C, Nb*L]
    w = w_ref[...].astype(jnp.float32)            # [K, C]
    b = b_ref[...].astype(jnp.float32)            # [K, 1]
    cent = c_ref[...].astype(jnp.float32)         # [K, C]

    # Per-descriptor inverse L2 norm over C kept as a [1, Nb*L] row; the
    # normalized xn = xs * s is never materialized (scale folded into the
    # K-sided tensors below).  rsqrt(max(ss, eps^2)) == 1 / max(||x||, eps).
    ss = jnp.sum(xs * xs, axis=0, keepdims=True)                 # [1, Nb*L]
    s = lax.rsqrt(jnp.maximum(ss, EPS * EPS))                    # [1, Nb*L]

    # soft_assign logits: W @ (xs * s) == (W @ xs) * s  (s is per-column).
    logits = jnp.dot(w, xs, preferred_element_type=jnp.float32) * s + b  # [K, Nb*L]

    # Softmax over clusters (axis 0); denominator reciprocal on the EUP slot.
    m = jnp.max(logits, axis=0, keepdims=True)
    e = jnp.exp(logits - m)
    a = e * pl.reciprocal(jnp.sum(e, axis=0, keepdims=True), approx=True)  # [K, Nb*L]

    # Per-element VLAD aggregation + fused normalizations (short unrolled loop).
    for i in range(nb):
        sl = slice(i * l, (i + 1) * l)
        a_i = a[:, sl]                                           # [K, L]
        s_i = s[:, sl]                                           # [1, L]
        xs_i = xs[:, sl]                                         # [C, L]
        a_sum = jnp.sum(a_i, axis=1, keepdims=True)              # [K, 1]
        # vlad[k,c] = sum_l a[k,l]*s[l]*xs[c,l] - cent[k,c]*sum_l a[k,l]
        # (descriptor-norm scale folded into the K-sided operand; contraction
        #  over L expressed directly so no transpose is materialized)
        v = lax.dot_general(
            a_i * s_i, xs_i,
            dimension_numbers=(((1,), (1,)), ((), ())),
            preferred_element_type=jnp.float32)                  # [K, C]
        v = v - cent * a_sum

        # Fused intra-norm (over C) + global L2 norm (over K*C):
        #   r[k]   = sum_c v[k,c]^2
        #   si[k]  = 1 / max(||v[k,:]||, eps)
        #   g_ss   = sum_k r[k]*si[k]^2  == ||intra-normalized vlad||^2
        #   out    = v * (si * 1/max(sqrt(g_ss), eps))
        r = jnp.sum(v * v, axis=1, keepdims=True)                # [K, 1]
        si = lax.rsqrt(jnp.maximum(r, EPS * EPS))                # [K, 1]
        g = lax.rsqrt(jnp.maximum(jnp.sum(r * (si * si)), EPS * EPS))
        o_ref[i] = (v * (si * g)).astype(o_ref.dtype)


def _tensorcores_per_chip():
    # v7x has 2 TensorCores per chip; v5e/v6e have 1.  Best-effort detection.
    try:
        kind = jax.devices()[0].device_kind.lower()
    except Exception:
        return 1
    return 2 if "v7" in kind else 1


def _pick_block_n(N, L, C, num_cores, itemsize=4, max_block_bytes=4 << 20):
    # Smallest nb making the slab lane extent (nb*L) a multiple of 128.
    nb_min = 128 // math.gcd(L, 128)
    # Largest nb (multiple of nb_min) whose input slab stays within a small
    # VMEM budget -- never fall back to one giant (C, N*L) block.
    nb_cap = max(nb_min,
                 (max_block_bytes // (C * L * itemsize)) // nb_min * nb_min)
    if num_cores >= 2:
        # Balanced grid >= num_cores so dimension_semantics=("parallel",)
        # actually shards the batch across TensorCores.
        nb = pl.cdiv(pl.cdiv(N, num_cores), nb_min) * nb_min
    else:
        # Single TC: one grid step (no padding / no per-step overhead) when
        # the whole batch fits under the block cap.
        nb = pl.cdiv(N, nb_min) * nb_min
    return int(min(nb, nb_cap))


def netvlad_forward(x, conv_w, conv_b, centroids, block_n=None):
    N, C, L = x.shape
    K = conv_w.shape[0]

    nb_min = 128 // math.gcd(L, 128)
    if block_n is None:
        nb = _pick_block_n(N, L, C, _tensorcores_per_chip())
    else:
        nb = max(nb_min, pl.cdiv(block_n, nb_min) * nb_min)
    nb = min(nb, pl.cdiv(N, nb_min) * nb_min)
    n_pad = pl.cdiv(N, nb) * nb

    # Lane-dense slab layout: xs[c, n*L + l] = x[n, c, l].  (If the producer
    # can emit this [C, N*L] layout directly, pass it through and skip this
    # extra HBM pass.)  Padding is skipped whenever nb divides N.
    xs = jnp.transpose(x, (1, 0, 2))                       # [C, N, L]
    if n_pad != N:
        xs = jnp.pad(xs, ((0, 0), (0, n_pad - N), (0, 0)))
    xs = xs.reshape(C, n_pad * L)

    b2d = conv_b.reshape(K, 1)

    out = pl.pallas_call(
        netvlad_kernel,
        out_shape=jax.ShapeDtypeStruct((n_pad, K, C), x.dtype),
        grid=(n_pad // nb,),
        in_specs=[
            pl.BlockSpec((C, nb * L), lambda i: (0, i)),   # slab block
            pl.BlockSpec((K, C), lambda i: (0, 0)),        # weight (resident)
            pl.BlockSpec((K, 1), lambda i: (0, 0)),        # bias   (resident)
            pl.BlockSpec((K, C), lambda i: (0, 0)),        # centroids (resident)
        ],
        out_specs=pl.BlockSpec((nb, K, C), lambda i: (i, 0, 0)),
        compiler_params=pltpu.CompilerParams(
            dimension_semantics=("parallel",)),
    )(xs, conv_w, b2d, centroids)

    return out[:N].reshape(N, K * C)


def netvlad_reference(x, conv_w, conv_b, centroids):
    # Pure-JAX reference reproducing the PyTorch forward exactly.
    N, C, L = x.shape
    K = conv_w.shape[0]
    nrm = jnp.sqrt(jnp.sum(x * x, axis=1, keepdims=True))
    xn = x / jnp.maximum(nrm, EPS)                               # [N, C, L]
    logits = jnp.einsum("kc,ncl->nkl", conv_w, xn) + conv_b[None, :, None]
    a = jax.nn.softmax(logits, axis=1)                           # [N, K, L]
    residual = xn[:, None, :, :] - centroids[None, :, :, None]   # [N, K, C, L]
    vlad = jnp.sum(residual * a[:, :, None, :], axis=-1)         # [N, K, C]
    inrm = jnp.sqrt(jnp.sum(vlad * vlad, axis=2, keepdims=True))
    vlad = vlad / jnp.maximum(inrm, EPS)
    vlad = vlad.reshape(N, K * C)
    gnrm = jnp.sqrt(jnp.sum(vlad * vlad, axis=1, keepdims=True))
    return vlad / jnp.maximum(gnrm, EPS)


if __name__ == "__main__":
    # Small shapes consistent with the module: dim (C) = 128,
    # num_clusters (K) = 16, L = 64 local descriptors, N = 6 batch elements.
    # Block size is auto-selected: single grid step (nb=6, no padding) on
    # single-TC chips, balanced 2-step grid (nb=4) on dual-TC v7x.
    N, C, L, K = 6, 128, 64, 16

    key = jax.random.PRNGKey(0)
    kx, kw, kb, kc = jax.random.split(key, 4)

    x = jax.random.normal(kx, (N, C, L), dtype=jnp.float32)
    # Deterministic synthetic parameters (not loaded from a checkpoint).
    conv_w = jax.random.normal(kw, (K, C), dtype=jnp.float32) * 0.05
    conv_b = jax.random.normal(kb, (K,), dtype=jnp.float32) * 0.05
    centroids = jax.random.uniform(kc, (K, C), dtype=jnp.float32)

    out = netvlad_forward(x, conv_w, conv_b, centroids)
    out = jax.block_until_ready(out)

    ref = netvlad_reference(x, conv_w, conv_b, centroids)
    assert out.shape == (N, K * C)
    # Tolerance covers rsqrt / EUP approx-reciprocal (softmax denominator) vs
    # exact sqrt/divide, and the algebraically-folded aggregation.
    assert jnp.allclose(out, ref, atol=2e-4, rtol=2e-4), (
        float(jnp.max(jnp.abs(out - ref))))

    print("KERNEL_OK")
</pallas_src>

<mosaic_0001>
module attributes {stable_mosaic.version = 11 : i64} {
  func.func @netvlad_kernel(%arg0: i32, %arg1: memref<128x384xf32, #tpu.memory_space<vmem>>, %arg2: memref<16x128xf32, #tpu.memory_space<vmem>>, %arg3: memref<16x1xf32, #tpu.memory_space<vmem>>, %arg4: memref<16x128xf32, #tpu.memory_space<vmem>>, %arg5: memref<6x16x128xf32, #tpu.memory_space<vmem>>) attributes {dimension_semantics = [#tpu.dimension_semantics<parallel>], iteration_bounds = array<i64: 1>, scalar_prefetch = 0 : i64, scratch_operands = 0 : i64, tpu.core_type = #tpu.core_type<tc>, window_params = [{transform_indices = @transform_0, window_bounds = array<i64: 128, 384>}, {pipeline_mode = #tpu.pipeline_mode<synchronous>, transform_indices = @transform_1, window_bounds = array<i64: 16, 128>}, {pipeline_mode = #tpu.pipeline_mode<synchronous>, transform_indices = @transform_2, window_bounds = array<i64: 16, 1>}, {pipeline_mode = #tpu.pipeline_mode<synchronous>, transform_indices = @transform_3, window_bounds = array<i64: 16, 128>}, {transform_indices = @transform_4, window_bounds = array<i64: 6, 16, 128>}]} {
    %c0 = arith.constant 0 : index
    %c0_0 = arith.constant 0 : index
    %0 = vector.load %arg1[%c0, %c0_0] : memref<128x384xf32, #tpu.memory_space<vmem>>, vector<128x384xf32>
    %c0_1 = arith.constant 0 : index
    %c0_2 = arith.constant 0 : index
    %1 = vector.load %arg2[%c0_1, %c0_2] : memref<16x128xf32, #tpu.memory_space<vmem>>, vector<16x128xf32>
    %c0_3 = arith.constant 0 : index
    %c0_4 = arith.constant 0 : index
    %2 = vector.load %arg3[%c0_3, %c0_4] : memref<16x1xf32, #tpu.memory_space<vmem>>, vector<16x1xf32>
    %c0_5 = arith.constant 0 : index
    %c0_6 = arith.constant 0 : index
    %3 = vector.load %arg4[%c0_5, %c0_6] : memref<16x128xf32, #tpu.memory_space<vmem>>, vector<16x128xf32>
    %4 = arith.mulf %0, %0 : vector<128x384xf32>
    %cst = arith.constant dense<0.000000e+00> : vector<384xf32>
    %5 = vector.multi_reduction <add>, %4, %cst [0] : vector<128x384xf32> to vector<384xf32>
    %6 = vector.shape_cast %5 : vector<384xf32> to vector<1x384xf32>
    %cst_7 = arith.constant 1.000000e-24 : f32
    %7 = vector.broadcast %cst_7 : f32 to vector<1x384xf32>
    %8 = arith.maximumf %6, %7 : vector<1x384xf32>
    %9 = math.rsqrt %8 : vector<1x384xf32>
    %cst_8 = arith.constant dense<0.000000e+00> : vector<16x384xf32>
    %10 = tpu.matmul %1, %0, %cst_8 {dimension_numbers = #tpu.dot_dimension_numbers<[1], [0], [0], [1], [0, 0, 1, 1], [], []>} : vector<16x128xf32>, vector<128x384xf32>, vector<16x384xf32> -> vector<16x384xf32>
    %11 = vector.broadcast %9 : vector<1x384xf32> to vector<16x384xf32>
    %12 = arith.mulf %10, %11 : vector<16x384xf32>
    %13 = vector.broadcast %2 : vector<16x1xf32> to vector<16x384xf32>
    %14 = arith.addf %12, %13 : vector<16x384xf32>
    %cst_9 = arith.constant dense<0xFF800000> : vector<384xf32>
    %15 = vector.multi_reduction <maximumf>, %14, %cst_9 [0] : vector<16x384xf32> to vector<384xf32>
    %16 = vector.shape_cast %15 : vector<384xf32> to vector<1x384xf32>
    %17 = vector.broadcast %16 : vector<1x384xf32> to vector<16x384xf32>
    %18 = arith.subf %14, %17 : vector<16x384xf32>
    %19 = math.exp %18 : vector<16x384xf32>
    %cst_10 = arith.constant dense<0.000000e+00> : vector<384xf32>
    %20 = vector.multi_reduction <add>, %19, %cst_10 [0] : vector<16x384xf32> to vector<384xf32>
    %21 = vector.shape_cast %20 : vector<384xf32> to vector<1x384xf32>
    %22 = tpu.reciprocal %21 {approx = true} : vector<1x384xf32> -> vector<1x384xf32>
    %23 = vector.broadcast %22 : vector<1x384xf32> to vector<16x384xf32>
    %24 = arith.mulf %19, %23 : vector<16x384xf32>
    %25 = vector.extract_strided_slice %24 {offsets = [0, 0], sizes = [16, 64], strides = [1, 1]} : vector<16x384xf32> to vector<16x64xf32>
    %26 = vector.extract_strided_slice %9 {offsets = [0, 0], sizes = [1, 64], strides = [1, 1]} : vector<1x384xf32> to vector<1x64xf32>
    %27 = vector.extract_strided_slice %0 {offsets = [0, 0], sizes = [128, 64], strides = [1, 1]} : vector<128x384xf32> to vector<128x64xf32>
    %cst_11 = arith.constant dense<0.000000e+00> : vector<16xf32>
    %28 = vector.multi_reduction <add>, %25, %cst_11 [1] : vector<16x64xf32> to vector<16xf32>
    %29 = vector.shape_cast %28 : vector<16xf32> to vector<16x1xf32>
    %30 = vector.broadcast %26 : vector<1x64xf32> to vector<16x64xf32>
    %31 = arith.mulf %25, %30 : vector<16x64xf32>
    %cst_12 = arith.constant dense<0.000000e+00> : vector<16x128xf32>
    %32 = tpu.matmul %31, %27, %cst_12 {dimension_numbers = #tpu.dot_dimension_numbers<[1], [1], [0], [0], [0, 0, 1, 0], [], []>} : vector<16x64xf32>, vector<128x64xf32>, vector<16x128xf32> -> vector<16x128xf32>
    %33 = vector.broadcast %29 : vector<16x1xf32> to vector<16x128xf32>
    %34 = arith.mulf %3, %33 : vector<16x128xf32>
    %35 = arith.subf %32, %34 : vector<16x128xf32>
    %36 = arith.mulf %35, %35 : vector<16x128xf32>
    %cst_13 = arith.constant dense<0.000000e+00> : vector<16xf32>
    %37 = vector.multi_reduction <add>, %36, %cst_13 [1] : vector<16x128xf32> to vector<16xf32>
    %38 = vector.shape_cast %37 : vector<16xf32> to vector<16x1xf32>
    %cst_14 = arith.constant 1.000000e-24 : f32
    %39 = vector.broadcast %cst_14 : f32 to vector<16x1xf32>
    %40 = arith.maximumf %38, %39 : vector<16x1xf32>
    %41 = math.rsqrt %40 : vector<16x1xf32>
    %42 = arith.mulf %41, %41 : vector<16x1xf32>
    %43 = arith.mulf %38, %42 : vector<16x1xf32>
    %44 = vector.shape_cast %43 : vector<16x1xf32> to vector<1x16x1xf32>
    %cst_15 = arith.constant dense<0.000000e+00> : vector<1xf32>
    %45 = vector.multi_reduction <add>, %44, %cst_15 [1, 2] : vector<1x16x1xf32> to vector<1xf32>
    %46 = vector.shape_cast %45 : vector<1xf32> to vector<1x1x1xf32>
    %47 = vector.extract %46[0, 0, 0] : f32 from vector<1x1x1xf32>
    %cst_16 = arith.constant 1.000000e-24 : f32
    %48 = arith.maximumf %47, %cst_16 : f32
    %49 = math.rsqrt %48 : f32
    %50 = vector.broadcast %49 : f32 to vector<16x1xf32>
    %51 = arith.mulf %41, %50 : vector<16x1xf32>
    %52 = vector.broadcast %51 : vector<16x1xf32> to vector<16x128xf32>
    %53 = arith.mulf %35, %52 : vector<16x128xf32>
    %c0_17 = arith.constant 0 : index
    %c0_18 = arith.constant 0 : index
    %c0_19 = arith.constant 0 : index
    %54 = vector.load %arg5[%c0_17, %c0_18, %c0_19] : memref<6x16x128xf32, #tpu.memory_space<vmem>>, vector<1x16x128xf32>
    %55 = vector.shape_cast %54 : vector<1x16x128xf32> to vector<16x128xf32>
    %56 = vector.shape_cast %53 : vector<16x128xf32> to vector<1x16x128xf32>
    tpu.vector_store %arg5[%c0_17, %c0_18, %c0_19], %56 {strides = array<i32>} : memref<6x16x128xf32, #tpu.memory_space<vmem>>, vector<1x16x128xf32>,
    %57 = vector.extract_strided_slice %24 {offsets = [0, 64], sizes = [16, 64], strides = [1, 1]} : vector<16x384xf32> to vector<16x64xf32>
    %58 = vector.extract_strided_slice %9 {offsets = [0, 64], sizes = [1, 64], strides = [1, 1]} : vector<1x384xf32> to vector<1x64xf32>
    %59 = vector.extract_strided_slice %0 {offsets = [0, 64], sizes = [128, 64], strides = [1, 1]} : vector<128x384xf32> to vector<128x64xf32>
    %cst_20 = arith.constant dense<0.000000e+00> : vector<16xf32>
    %60 = vector.multi_reduction <add>, %57, %cst_20 [1] : vector<16x64xf32> to vector<16xf32>
    %61 = vector.shape_cast %60 : vector<16xf32> to vector<16x1xf32>
    %62 = vector.broadcast %58 : vector<1x64xf32> to vector<16x64xf32>
    %63 = arith.mulf %57, %62 : vector<16x64xf32>
    %cst_21 = arith.constant dense<0.000000e+00> : vector<16x128xf32>
    %64 = tpu.matmul %63, %59, %cst_21 {dimension_numbers = #tpu.dot_dimension_numbers<[1], [1], [0], [0], [0, 0, 1, 0], [], []>} : vector<16x64xf32>, vector<128x64xf32>, vector<16x128xf32> -> vector<16x128xf32>
    %65 = vector.broadcast %61 : vector<16x1xf32> to vector<16x128xf32>
    %66 = arith.mulf %3, %65 : vector<16x128xf32>
    %67 = arith.subf %64, %66 : vector<16x128xf32>
    %68 = arith.mulf %67, %67 : vector<16x128xf32>
    %cst_22 = arith.constant dense<0.000000e+00> : vector<16xf32>
    %69 = vector.multi_reduction <add>, %68, %cst_22 [1] : vector<16x128xf32> to vector<16xf32>
    %70 = vector.shape_cast %69 : vector<16xf32> to vector<16x1xf32>
    %cst_23 = arith.constant 1.000000e-24 : f32
    %71 = vector.broadcast %cst_23 : f32 to vector<16x1xf32>
    %72 = arith.maximumf %70, %71 : vector<16x1xf32>
    %73 = math.rsqrt %72 : vector<16x1xf32>
    %74 = arith.mulf %73, %73 : vector<16x1xf32>
    %75 = arith.mulf %70, %74 : vector<16x1xf32>
    %76 = vector.shape_cast %75 : vector<16x1xf32> to vector<1x16x1xf32>
    %cst_24 = arith.constant dense<0.000000e+00> : vector<1xf32>
    %77 = vector.multi_reduction <add>, %76, %cst_24 [1, 2] : vector<1x16x1xf32> to vector<1xf32>
    %78 = vector.shape_cast %77 : vector<1xf32> to vector<1x1x1xf32>
    %79 = vector.extract %78[0, 0, 0] : f32 from vector<1x1x1xf32>
    %cst_25 = arith.constant 1.000000e-24 : f32
    %80 = arith.maximumf %79, %cst_25 : f32
    %81 = math.rsqrt %80 : f32
    %82 = vector.broadcast %81 : f32 to vector<16x1xf32>
    %83 = arith.mulf %73, %82 : vector<16x1xf32>
    %84 = vector.broadcast %83 : vector<16x1xf32> to vector<16x128xf32>
    %85 = arith.mulf %67, %84 : vector<16x128xf32>
    %c1 = arith.constant 1 : index
    %c0_26 = arith.constant 0 : index
    %c0_27 = arith.constant 0 : index
    %86 = vector.load %arg5[%c1, %c0_26, %c0_27] : memref<6x16x128xf32, #tpu.memory_space<vmem>>, vector<1x16x128xf32>
    %87 = vector.shape_cast %86 : vector<1x16x128xf32> to vector<16x128xf32>
    %88 = vector.shape_cast %85 : vector<16x128xf32> to vector<1x16x128xf32>
    tpu.vector_store %arg5[%c1, %c0_26, %c0_27], %88 {strides = array<i32>} : memref<6x16x128xf32, #tpu.memory_space<vmem>>, vector<1x16x128xf32>,
    %89 = vector.extract_strided_slice %24 {offsets = [0, 128], sizes = [16, 64], strides = [1, 1]} : vector<16x384xf32> to vector<16x64xf32>
    %90 = vector.extract_strided_slice %9 {offsets = [0, 128], sizes = [1, 64], strides = [1, 1]} : vector<1x384xf32> to vector<1x64xf32>
    %91 = vector.extract_strided_slice %0 {offsets = [0, 128], sizes = [128, 64], strides = [1, 1]} : vector<128x384xf32> to vector<128x64xf32>
    %cst_28 = arith.constant dense<0.000000e+00> : vector<16xf32>
    %92 = vector.multi_reduction <add>, %89, %cst_28 [1] : vector<16x64xf32> to vector<16xf32>
    %93 = vector.shape_cast %92 : vector<16xf32> to vector<16x1xf32>
    %94 = vector.broadcast %90 : vector<1x64xf32> to vector<16x64xf32>
    %95 = arith.mulf %89, %94 : vector<16x64xf32>
    %cst_29 = arith.constant dense<0.000000e+00> : vector<16x128xf32>
    %96 = tpu.matmul %95, %91, %cst_29 {dimension_numbers = #tpu.dot_dimension_numbers<[1], [1], [0], [0], [0, 0, 1, 0], [], []>} : vector<16x64xf32>, vector<128x64xf32>, vector<16x128xf32> -> vector<16x128xf32>
    %97 = vector.broadcast %93 : vector<16x1xf32> to vector<16x128xf32>
    %98 = arith.mulf %3, %97 : vector<16x128xf32>
    %99 = arith.subf %96, %98 : vector<16x128xf32>
    %100 = arith.mulf %99, %99 : vector<16x128xf32>
    %cst_30 = arith.constant dense<0.000000e+00> : vector<16xf32>
    %101 = vector.multi_reduction <add>, %100, %cst_30 [1] : vector<16x128xf32> to vector<16xf32>
    %102 = vector.shape_cast %101 : vector<16xf32> to vector<16x1xf32>
    %cst_31 = arith.constant 1.000000e-24 : f32
    %103 = vector.broadcast %cst_31 : f32 to vector<16x1xf32>
    %104 = arith.maximumf %102, %103 : vector<16x1xf32>
    %105 = math.rsqrt %104 : vector<16x1xf32>
    %106 = arith.mulf %105, %105 : vector<16x1xf32>
    %107 = arith.mulf %102, %106 : vector<16x1xf32>
    %108 = vector.shape_cast %107 : vector<16x1xf32> to vector<1x16x1xf32>
    %cst_32 = arith.constant dense<0.000000e+00> : vector<1xf32>
    %109 = vector.multi_reduction <add>, %108, %cst_32 [1, 2] : vector<1x16x1xf32> to vector<1xf32>
    %110 = vector.shape_cast %109 : vector<1xf32> to vector<1x1x1xf32>
    %111 = vector.extract %110[0, 0, 0] : f32 from vector<1x1x1xf32>
    %cst_33 = arith.constant 1.000000e-24 : f32
    %112 = arith.maximumf %111, %cst_33 : f32
    %113 = math.rsqrt %112 : f32
    %114 = vector.broadcast %113 : f32 to vector<16x1xf32>
    %115 = arith.mulf %105, %114 : vector<16x1xf32>
    %116 = vector.broadcast %115 : vector<16x1xf32> to vector<16x128xf32>
    %117 = arith.mulf %99, %116 : vector<16x128xf32>
    %c2 = arith.constant 2 : index
    %c0_34 = arith.constant 0 : index
    %c0_35 = arith.constant 0 : index
    %118 = vector.load %arg5[%c2, %c0_34, %c0_35] : memref<6x16x128xf32, #tpu.memory_space<vmem>>, vector<1x16x128xf32>
    %119 = vector.shape_cast %118 : vector<1x16x128xf32> to vector<16x128xf32>
    %120 = vector.shape_cast %117 : vector<16x128xf32> to vector<1x16x128xf32>
    tpu.vector_store %arg5[%c2, %c0_34, %c0_35], %120 {strides = array<i32>} : memref<6x16x128xf32, #tpu.memory_space<vmem>>, vector<1x16x128xf32>,
    %121 = vector.extract_strided_slice %24 {offsets = [0, 192], sizes = [16, 64], strides = [1, 1]} : vector<16x384xf32> to vector<16x64xf32>
    %122 = vector.extract_strided_slice %9 {offsets = [0, 192], sizes = [1, 64], strides = [1, 1]} : vector<1x384xf32> to vector<1x64xf32>
    %123 = vector.extract_strided_slice %0 {offsets = [0, 192], sizes = [128, 64], strides = [1, 1]} : vector<128x384xf32> to vector<128x64xf32>
    %cst_36 = arith.constant dense<0.000000e+00> : vector<16xf32>
    %124 = vector.multi_reduction <add>, %121, %cst_36 [1] : vector<16x64xf32> to vector<16xf32>
    %125 = vector.shape_cast %124 : vector<16xf32> to vector<16x1xf32>
    %126 = vector.broadcast %122 : vector<1x64xf32> to vector<16x64xf32>
    %127 = arith.mulf %121, %126 : vector<16x64xf32>
    %cst_37 = arith.constant dense<0.000000e+00> : vector<16x128xf32>
    %128 = tpu.matmul %127, %123, %cst_37 {dimension_numbers = #tpu.dot_dimension_numbers<[1], [1], [0], [0], [0, 0, 1, 0], [], []>} : vector<16x64xf32>, vector<128x64xf32>, vector<16x128xf32> -> vector<16x128xf32>
    %129 = vector.broadcast %125 : vector<16x1xf32> to vector<16x128xf32>
    %130 = arith.mulf %3, %129 : vector<16x128xf32>
    %131 = arith.subf %128, %130 : vector<16x128xf32>
    %132 = arith.mulf %131, %131 : vector<16x128xf32>
    %cst_38 = arith.constant dense<0.000000e+00> : vector<16xf32>
    %133 = vector.multi_reduction <add>, %132, %cst_38 [1] : vector<16x128xf32> to vector<16xf32>
    %134 = vector.shape_cast %133 : vector<16xf32> to vector<16x1xf32>
    %cst_39 = arith.constant 1.000000e-24 : f32
    %135 = vector.broadcast %cst_39 : f32 to vector<16x1xf32>
    %136 = arith.maximumf %134, %135 : vector<16x1xf32>
    %137 = math.rsqrt %136 : vector<16x1xf32>
    %138 = arith.mulf %137, %137 : vector<16x1xf32>
    %139 = arith.mulf %134, %138 : vector<16x1xf32>
    %140 = vector.shape_cast %139 : vector<16x1xf32> to vector<1x16x1xf32>
    %cst_40 = arith.constant dense<0.000000e+00> : vector<1xf32>
    %141 = vector.multi_reduction <add>, %140, %cst_40 [1, 2] : vector<1x16x1xf32> to vector<1xf32>
    %142 = vector.shape_cast %141 : vector<1xf32> to vector<1x1x1xf32>
    %143 = vector.extract %142[0, 0, 0] : f32 from vector<1x1x1xf32>
    %cst_41 = arith.constant 1.000000e-24 : f32
    %144 = arith.maximumf %143, %cst_41 : f32
    %145 = math.rsqrt %144 : f32
    %146 = vector.broadcast %145 : f32 to vector<16x1xf32>
    %147 = arith.mulf %137, %146 : vector<16x1xf32>
    %148 = vector.broadcast %147 : vector<16x1xf32> to vector<16x128xf32>
    %149 = arith.mulf %131, %148 : vector<16x128xf32>
    %c3 = arith.constant 3 : index
    %c0_42 = arith.constant 0 : index
    %c0_43 = arith.constant 0 : index
    %150 = vector.load %arg5[%c3, %c0_42, %c0_43] : memref<6x16x128xf32, #tpu.memory_space<vmem>>, vector<1x16x128xf32>
    %151 = vector.shape_cast %150 : vector<1x16x128xf32> to vector<16x128xf32>
    %152 = vector.shape_cast %149 : vector<16x128xf32> to vector<1x16x128xf32>
    tpu.vector_store %arg5[%c3, %c0_42, %c0_43], %152 {strides = array<i32>} : memref<6x16x128xf32, #tpu.memory_space<vmem>>, vector<1x16x128xf32>,
    %153 = vector.extract_strided_slice %24 {offsets = [0, 256], sizes = [16, 64], strides = [1, 1]} : vector<16x384xf32> to vector<16x64xf32>
    %154 = vector.extract_strided_slice %9 {offsets = [0, 256], sizes = [1, 64], strides = [1, 1]} : vector<1x384xf32> to vector<1x64xf32>
    %155 = vector.extract_strided_slice %0 {offsets = [0, 256], sizes = [128, 64], strides = [1, 1]} : vector<128x384xf32> to vector<128x64xf32>
    %cst_44 = arith.constant dense<0.000000e+00> : vector<16xf32>
    %156 = vector.multi_reduction <add>, %153, %cst_44 [1] : vector<16x64xf32> to vector<16xf32>
    %157 = vector.shape_cast %156 : vector<16xf32> to vector<16x1xf32>
    %158 = vector.broadcast %154 : vector<1x64xf32> to vector<16x64xf32>
    %159 = arith.mulf %153, %158 : vector<16x64xf32>
    %cst_45 = arith.constant dense<0.000000e+00> : vector<16x128xf32>
    %160 = tpu.matmul %159, %155, %cst_45 {dimension_numbers = #tpu.dot_dimension_numbers<[1], [1], [0], [0], [0, 0, 1, 0], [], []>} : vector<16x64xf32>, vector<128x64xf32>, vector<16x128xf32> -> vector<16x128xf32>
    %161 = vector.broadcast %157 : vector<16x1xf32> to vector<16x128xf32>
    %162 = arith.mulf %3, %161 : vector<16x128xf32>
    %163 = arith.subf %160, %162 : vector<16x128xf32>
    %164 = arith.mulf %163, %163 : vector<16x128xf32>
    %cst_46 = arith.constant dense<0.000000e+00> : vector<16xf32>
    %165 = vector.multi_reduction <add>, %164, %cst_46 [1] : vector<16x128xf32> to vector<16xf32>
    %166 = vector.shape_cast %165 : vector<16xf32> to vector<16x1xf32>
    %cst_47 = arith.constant 1.000000e-24 : f32
    %167 = vector.broadcast %cst_47 : f32 to vector<16x1xf32>
    %168 = arith.maximumf %166, %167 : vector<16x1xf32>
    %169 = math.rsqrt %168 : vector<16x1xf32>
    %170 = arith.mulf %169, %169 : vector<16x1xf32>
    %171 = arith.mulf %166, %170 : vector<16x1xf32>
    %172 = vector.shape_cast %171 : vector<16x1xf32> to vector<1x16x1xf32>
    %cst_48 = arith.constant dense<0.000000e+00> : vector<1xf32>
    %173 = vector.multi_reduction <add>, %172, %cst_48 [1, 2] : vector<1x16x1xf32> to vector<1xf32>
    %174 = vector.shape_cast %173 : vector<1xf32> to vector<1x1x1xf32>
    %175 = vector.extract %174[0, 0, 0] : f32 from vector<1x1x1xf32>
    %cst_49 = arith.constant 1.000000e-24 : f32
    %176 = arith.maximumf %175, %cst_49 : f32
    %177 = math.rsqrt %176 : f32
    %178 = vector.broadcast %177 : f32 to vector<16x1xf32>
    %179 = arith.mulf %169, %178 : vector<16x1xf32>
    %180 = vector.broadcast %179 : vector<16x1xf32> to vector<16x128xf32>
    %181 = arith.mulf %163, %180 : vector<16x128xf32>
    %c4 = arith.constant 4 : index
    %c0_50 = arith.constant 0 : index
    %c0_51 = arith.constant 0 : index
    %182 = vector.load %arg5[%c4, %c0_50, %c0_51] : memref<6x16x128xf32, #tpu.memory_space<vmem>>, vector<1x16x128xf32>
    %183 = vector.shape_cast %182 : vector<1x16x128xf32> to vector<16x128xf32>
    %184 = vector.shape_cast %181 : vector<16x128xf32> to vector<1x16x128xf32>
    tpu.vector_store %arg5[%c4, %c0_50, %c0_51], %184 {strides = array<i32>} : memref<6x16x128xf32, #tpu.memory_space<vmem>>, vector<1x16x128xf32>,
    %185 = vector.extract_strided_slice %24 {offsets = [0, 320], sizes = [16, 64], strides = [1, 1]} : vector<16x384xf32> to vector<16x64xf32>
    %186 = vector.extract_strided_slice %9 {offsets = [0, 320], sizes = [1, 64], strides = [1, 1]} : vector<1x384xf32> to vector<1x64xf32>
    %187 = vector.extract_strided_slice %0 {offsets = [0, 320], sizes = [128, 64], strides = [1, 1]} : vector<128x384xf32> to vector<128x64xf32>
    %cst_52 = arith.constant dense<0.000000e+00> : vector<16xf32>
    %188 = vector.multi_reduction <add>, %185, %cst_52 [1] : vector<16x64xf32> to vector<16xf32>
    %189 = vector.shape_cast %188 : vector<16xf32> to vector<16x1xf32>
    %190 = vector.broadcast %186 : vector<1x64xf32> to vector<16x64xf32>
    %191 = arith.mulf %185, %190 : vector<16x64xf32>
    %cst_53 = arith.constant dense<0.000000e+00> : vector<16x128xf32>
    %192 = tpu.matmul %191, %187, %cst_53 {dimension_numbers = #tpu.dot_dimension_numbers<[1], [1], [0], [0], [0, 0, 1, 0], [], []>} : vector<16x64xf32>, vector<128x64xf32>, vector<16x128xf32> -> vector<16x128xf32>
    %193 = vector.broadcast %189 : vector<16x1xf32> to vector<16x128xf32>
    %194 = arith.mulf %3, %193 : vector<16x128xf32>
    %195 = arith.subf %192, %194 : vector<16x128xf32>
    %196 = arith.mulf %195, %195 : vector<16x128xf32>
    %cst_54 = arith.constant dense<0.000000e+00> : vector<16xf32>
    %197 = vector.multi_reduction <add>, %196, %cst_54 [1] : vector<16x128xf32> to vector<16xf32>
    %198 = vector.shape_cast %197 : vector<16xf32> to vector<16x1xf32>
    %cst_55 = arith.constant 1.000000e-24 : f32
    %199 = vector.broadcast %cst_55 : f32 to vector<16x1xf32>
    %200 = arith.maximumf %198, %199 : vector<16x1xf32>
    %201 = math.rsqrt %200 : vector<16x1xf32>
    %202 = arith.mulf %201, %201 : vector<16x1xf32>
    %203 = arith.mulf %198, %202 : vector<16x1xf32>
    %204 = vector.shape_cast %203 : vector<16x1xf32> to vector<1x16x1xf32>
    %cst_56 = arith.constant dense<0.000000e+00> : vector<1xf32>
    %205 = vector.multi_reduction <add>, %204, %cst_56 [1, 2] : vector<1x16x1xf32> to vector<1xf32>
    %206 = vector.shape_cast %205 : vector<1xf32> to vector<1x1x1xf32>
    %207 = vector.extract %206[0, 0, 0] : f32 from vector<1x1x1xf32>
    %cst_57 = arith.constant 1.000000e-24 : f32
    %208 = arith.maximumf %207, %cst_57 : f32
    %209 = math.rsqrt %208 : f32
    %210 = vector.broadcast %209 : f32 to vector<16x1xf32>
    %211 = arith.mulf %201, %210 : vector<16x1xf32>
    %212 = vector.broadcast %211 : vector<16x1xf32> to vector<16x128xf32>
    %213 = arith.mulf %195, %212 : vector<16x128xf32>
    %c5 = arith.constant 5 : index
    %c0_58 = arith.constant 0 : index
    %c0_59 = arith.constant 0 : index
    %214 = vector.load %arg5[%c5, %c0_58, %c0_59] : memref<6x16x128xf32, #tpu.memory_space<vmem>>, vector<1x16x128xf32>
    %215 = vector.shape_cast %214 : vector<1x16x128xf32> to vector<16x128xf32>
    %216 = vector.shape_cast %213 : vector<16x128xf32> to vector<1x16x128xf32>
    tpu.vector_store %arg5[%c5, %c0_58, %c0_59], %216 {strides = array<i32>} : memref<6x16x128xf32, #tpu.memory_space<vmem>>, vector<1x16x128xf32>,
    return
  }
  func.func @transform_0(%arg0: i32) -> (i32, i32) {
    %c0_i32 = arith.constant 0 : i32
    %c0_i32_0 = arith.constant 0 : i32
    return %c0_i32, %arg0 : i32, i32
  }
  func.func @transform_1(%arg0: i32) -> (i32, i32) {
    %c0_i32 = arith.constant 0 : i32
    %c0_i32_0 = arith.constant 0 : i32
    %c0_i32_1 = arith.constant 0 : i32
    return %c0_i32, %c0_i32_0 : i32, i32
  }
  func.func @transform_2(%arg0: i32) -> (i32, i32) {
    %c0_i32 = arith.constant 0 : i32
    %c0_i32_0 = arith.constant 0 : i32
    %c0_i32_1 = arith.constant 0 : i32
    return %c0_i32, %c0_i32_0 : i32, i32
  }
  func.func @transform_3(%arg0: i32) -> (i32, i32) {
    %c0_i32 = arith.constant 0 : i32
    %c0_i32_0 = arith.constant 0 : i32
    %c0_i32_1 = arith.constant 0 : i32
    return %c0_i32, %c0_i32_0 : i32, i32
  }
  func.func @transform_4(%arg0: i32) -> (i32, i32, i32) {
    %c0_i32 = arith.constant 0 : i32
    %c0_i32_0 = arith.constant 0 : i32
    %c0_i32_1 = arith.constant 0 : i32
    return %arg0, %c0_i32, %c0_i32_0 : i32, i32, i32
  }
}

</mosaic_0001>

<llo_original>
// kernel: tpu_custom_call.1
$region0: #{tpu_custom_call.1}
  #allocation0 [shape = 'u32[]', space=smem, size = 0x4, offset = 0x4, fixed_abs, tag = 'smem constant byte address 0x4 - core index']
  #allocation1 [shape = 'u32[144,128]{1,0:T(1,128)}', space=vmem, size = 0x12000, scoped, tag = 'internal scratch']
  %s0 = inlined_call_operand.hbm [shape: f32[128,384], index: 0, kind: input, shape index: {}]
  %s1 = inlined_call_operand.vmem [shape: f32[16,128], index: 1, kind: input, shape index: {}]
  %s2 = inlined_call_operand.vmem [shape: f32[16,1], index: 2, kind: input, shape index: {}]
  %s3 = inlined_call_operand.hbm [shape: f32[16,128], index: 3, kind: input, shape index: {}]
  %s4 = inlined_call_operand.hbm [shape: f32[6,16,128], index: 4, kind: output, shape index: {}]
  %s5 = sld [smem:[#allocation0]]
  $region34: #{tpu_custom_call.1} parent=0
    _
  %s7 = ssub.s32 1, %s5
  %s8 = scalar_select 0, %s7, %s5
  $region1: #{tpu_custom_call.1} parent=0
    #allocation2 [shape = 'u8[196608]{0}', space=vmem, size = 0x30000, scoped, tag = 'input window, operand 0, single buffered']
    #allocation3 [shape = 's32[1]{0}', space=sflag, size = 0x4, scoped, tag = 'scoped memory for tpu_custom_call.1']
    #allocation4 [shape = 's32[1]{0}', space=sflag, size = 0x4, scoped, tag = 'scoped memory for tpu_custom_call.1']
    #allocation5 [shape = 'u8[8192]{0}', space=vmem, size = 0x2000, scoped, tag = 'input window, operand 3, single buffered']
    #allocation6 [shape = 's32[1]{0}', space=sflag, size = 0x4, scoped, tag = 'scoped memory for tpu_custom_call.1']
    #allocation7 [shape = 'u8[49152]{0}', space=vmem, size = 0xc000, scoped, tag = 'output window, operand 0, single buffered']
    %9 = vsyncpa [#allocation3], 0
    %10 = vsyncpa [#allocation6], 0
    %11 = vsyncpa [#allocation4], 0
    // Predicated region
    $region2: #{tpu_custom_call.1} parent=1 // pred_check
      _
    $region3: #{tpu_custom_call.1} parent=1 // pred_check_branch
      %13 = sbr.rel (0) target = $region5
    $region4: #{tpu_custom_call.1} parent=1 // pred_region
      %s15 = ssub.s32 6144, 6144
      %16 = vsyncadd [#allocation3], %s15
      %s17 = sshll.u32 [#allocation2], 4
      %s18 = int_to_ptr.vmem [resolvable:$true] %s17
      %23 = dma.hbm_to_vmem [thread:$0]  %s0, 6144, %s18, [#allocation3], 384, 384, 24
    $region5: #{tpu_custom_call.1} parent=1 // pred_fallthru
      _
    // Predicated region
    $region6: #{tpu_custom_call.1} parent=1 // pred_check
      _
    $region7: #{tpu_custom_call.1} parent=1 // pred_check_branch
      %25 = sbr.rel (0) target = $region9
    $region8: #{tpu_custom_call.1} parent=1 // pred_region
      _
    $region9: #{tpu_custom_call.1} parent=1 // pred_fallthru
      _
    // Predicated region
    $region10: #{tpu_custom_call.1} parent=1 // pred_check
      _
    $region11: #{tpu_custom_call.1} parent=1 // pred_check_branch
      %27 = sbr.rel (0) target = $region13
    $region12: #{tpu_custom_call.1} parent=1 // pred_region
      _
    $region13: #{tpu_custom_call.1} parent=1 // pred_fallthru
      _
    // Predicated region
    $region14: #{tpu_custom_call.1} parent=1 // pred_check
      _
    $region15: #{tpu_custom_call.1} parent=1 // pred_check_branch
      %29 = sbr.rel (0) target = $region17
    $region16: #{tpu_custom_call.1} parent=1 // pred_region
      %s31 = ssub.s32 256, 256
      %32 = vsyncadd [#allocation6], %s31
      %s33 = sshll.u32 [#allocation5], 4
      %s34 = int_to_ptr.vmem [resolvable:$true] %s33
      %39 = dma.hbm_to_vmem [thread:$0]  %s3, 256, %s34, [#allocation6], 128, 128, 8
    $region17: #{tpu_custom_call.1} parent=1 // pred_fallthru
      _
    // Predicated region
    $region18: #{tpu_custom_call.1} parent=1 // pred_check
      _
    $region19: #{tpu_custom_call.1} parent=1 // pred_check_branch
      %41 = sbr.rel (0) target = $region21
    $region20: #{tpu_custom_call.1} parent=1 // pred_region
      %42 = dma.done [#allocation3], 6144
    $region21: #{tpu_custom_call.1} parent=1 // pred_fallthru
      _
    // Predicated region
    $region22: #{tpu_custom_call.1} parent=1 // pred_check
      _
    $region23: #{tpu_custom_call.1} parent=1 // pred_check_branch
      %44 = sbr.rel (0) target = $region25
    $region24: #{tpu_custom_call.1} parent=1 // pred_region
      %45 = dma.done [#allocation6], 256
    $region25: #{tpu_custom_call.1} parent=1 // pred_fallthru
      _
    %v46 = vld [vmem:[#allocation2] sm:$0xff]
    %v47 = vld [vmem:[#allocation2 + $0x8] sm:$0xff]
    %v48 = vld [vmem:[#allocation2 + $0x10] sm:$0xff]
    %v49 = vld [vmem:[#allocation2 + $0x18] sm:$0xff]
    %v50 = vld [vmem:[#allocation2 + $0x20] sm:$0xff]
    %v51 = vld [vmem:[#allocation2 + $0x28] sm:$0xff]
    %v52 = vld [vmem:[#allocation2 + $0x30] sm:$0xff]
    %v53 = vld [vmem:[#allocation2 + $0x38] sm:$0xff]
    %v54 = vld [vmem:[#allocation2 + $0x40] sm:$0xff]
    %v55 = vld [vmem:[#allocation2 + $0x48] sm:$0xff]
    %v56 = vld [vmem:[#allocation2 + $0x50] sm:$0xff]
    %v57 = vld [vmem:[#allocation2 + $0x58] sm:$0xff]
    %v58 = vld [vmem:[#allocation2 + $0x60] sm:$0xff]
    %v59 = vld [vmem:[#allocation2 + $0x68] sm:$0xff]
    %v60 = vld [vmem:[#allocation2 + $0x70] sm:$0xff]
    %v61 = vld [vmem:[#allocation2 + $0x78] sm:$0xff]
    %v62 = vld [vmem:[#allocation2 + $0x80] sm:$0xff]
    %v63 = vld [vmem:[#allocation2 + $0x88] sm:$0xff]
    %v64 = vld [vmem:[#allocation2 + $0x90] sm:$0xff]
    %v65 = vld [vmem:[#allocation2 + $0x98] sm:$0xff]
    %v66 = vld [vmem:[#allocation2 + $0xa0] sm:$0xff]
    %v67 = vld [vmem:[#allocation2 + $0xa8] sm:$0xff]
    %v68 = vld [vmem:[#allocation2 + $0xb0] sm:$0xff]
    %v69 = vld [vmem:[#allocation2 + $0xb8] sm:$0xff]
    %v70 = vld [vmem:[#allocation2 + $0xc0] sm:$0xff]
    %v71 = vld [vmem:[#allocation2 + $0xc8] sm:$0xff]
    %v72 = vld [vmem:[#allocation2 + $0xd0] sm:$0xff]
    %v73 = vld [vmem:[#allocation2 + $0xd8] sm:$0xff]
    %v74 = vld [vmem:[#allocation2 + $0xe0] sm:$0xff]
    %v75 = vld [vmem:[#allocation2 + $0xe8] sm:$0xff]
    %v76 = vld [vmem:[#allocation2 + $0xf0] sm:$0xff]
    %v77 = vld [vmem:[#allocation2 + $0xf8] sm:$0xff]
    %v78 = vld [vmem:[#allocation2 + $0x100] sm:$0xff]
    %v79 = vld [vmem:[#allocation2 + $0x108] sm:$0xff]
    %v80 = vld [vmem:[#allocation2 + $0x110] sm:$0xff]
    %v81 = vld [vmem:[#allocation2 + $0x118] sm:$0xff]
    %v82 = vld [vmem:[#allocation2 + $0x120] sm:$0xff]
    %v83 = vld [vmem:[#allocation2 + $0x128] sm:$0xff]
    %v84 = vld [vmem:[#allocation2 + $0x130] sm:$0xff]
    %v85 = vld [vmem:[#allocation2 + $0x138] sm:$0xff]
    %v86 = vld [vmem:[#allocation2 + $0x140] sm:$0xff]
    %v87 = vld [vmem:[#allocation2 + $0x148] sm:$0xff]
    %v88 = vld [vmem:[#allocation2 + $0x150] sm:$0xff]
    %v89 = vld [vmem:[#allocation2 + $0x158] sm:$0xff]
    %v90 = vld [vmem:[#allocation2 + $0x160] sm:$0xff]
    %v91 = vld [vmem:[#allocation2 + $0x168] sm:$0xff]
    %v92 = vld [vmem:[#allocation2 + $0x170] sm:$0xff]
    %v93 = vld [vmem:[#allocation2 + $0x178] sm:$0xff]
    %v94 = vld [vmem:[%s1] sm:$0xff]
    %v95 = vld [vmem:[%s1 + $0x8] sm:$0xff]
    %v96 = vld [vmem:[%s2] sm:$0xff]
    %v97 = vld [vmem:[%s2 + $0x8] sm:$0xff]
    %v98 = vld [vmem:[#allocation5] sm:$0xff]
    %v99 = vld [vmem:[#allocation5 + $0x8] sm:$0xff]
    %v100 = vmul.f32 %v46, %v46
    %v101 = vmul.f32 %v47, %v47
    %v102 = vmul.f32 %v48, %v48
    %v103 = vmul.f32 %v49, %v49
    %v104 = vmul.f32 %v50, %v50
    %v105 = vmul.f32 %v51, %v51
    %v106 = vmul.f32 %v52, %v52
    %v107 = vmul.f32 %v53, %v53
    %v108 = vmul.f32 %v54, %v54
    %v109 = vmul.f32 %v55, %v55
    %v110 = vmul.f32 %v56, %v56
    %v111 = vmul.f32 %v57, %v57
    %v112 = vmul.f32 %v58, %v58
    %v113 = vmul.f32 %v59, %v59
    %v114 = vmul.f32 %v60, %v60
    %v115 = vmul.f32 %v61, %v61
    %v116 = vmul.f32 %v62, %v62
    %v117 = vmul.f32 %v63, %v63
    %v118 = vmul.f32 %v64, %v64
    %v119 = vmul.f32 %v65, %v65
    %v120 = vmul.f32 %v66, %v66
    %v121 = vmul.f32 %v67, %v67
    %v122 = vmul.f32 %v68, %v68
    %v123 = vmul.f32 %v69, %v69
    %v124 = vmul.f32 %v70, %v70
    %v125 = vmul.f32 %v71, %v71
    %v126 = vmul.f32 %v72, %v72
    %v127 = vmul.f32 %v73, %v73
    %v128 = vmul.f32 %v74, %v74
    %v129 = vmul.f32 %v75, %v75
    %v130 = vmul.f32 %v76, %v76
    %v131 = vmul.f32 %v77, %v77
    %v132 = vmul.f32 %v78, %v78
    %v133 = vmul.f32 %v79, %v79
    %v134 = vmul.f32 %v80, %v80
    %v135 = vmul.f32 %v81, %v81
    %v136 = vmul.f32 %v82, %v82
    %v137 = vmul.f32 %v83, %v83
    %v138 = vmul.f32 %v84, %v84
    %v139 = vmul.f32 %v85, %v85
    %v140 = vmul.f32 %v86, %v86
    %v141 = vmul.f32 %v87, %v87
    %v142 = vmul.f32 %v88, %v88
    %v143 = vmul.f32 %v89, %v89
    %v144 = vmul.f32 %v90, %v90
    %v145 = vmul.f32 %v91, %v91
    %v146 = vmul.f32 %v92, %v92
    %v147 = vmul.f32 %v93, %v93
    %v148 = vadd.f32 %v100, %v103
    %v149 = vadd.f32 %v148, %v106
    %v150 = vadd.f32 %v149, %v109
    %v151 = vadd.f32 %v150, %v112
    %v152 = vadd.f32 %v151, %v115
    %v153 = vadd.f32 %v152, %v118
    %v154 = vadd.f32 %v153, %v121
    %v155 = vadd.f32 %v154, %v124
    %v156 = vadd.f32 %v155, %v127
    %v157 = vadd.f32 %v156, %v130
    %v158 = vadd.f32 %v157, %v133
    %v159 = vadd.f32 %v158, %v136
    %v160 = vadd.f32 %v159, %v139
    %v161 = vadd.f32 %v160, %v142
    %v162 = vadd.f32 %v161, %v145
    %v163 = vrot.slane %v162, 4
    %v164 = vadd.f32 %v162, %v163
    %v165 = vrot.slane %v164, 2
    %v166 = vadd.f32 %v164, %v165
    %v167 = vrot.slane %v166, 1
    %v168 = vadd.f32 %v166, %v167
    %v169 = vadd.f32 %v101, %v104
    %v170 = vadd.f32 %v169, %v107
    %v171 = vadd.f32 %v170, %v110
    %v172 = vadd.f32 %v171, %v113
    %v173 = vadd.f32 %v172, %v116
    %v174 = vadd.f32 %v173, %v119
    %v175 = vadd.f32 %v174, %v122
    %v176 = vadd.f32 %v175, %v125
    %v177 = vadd.f32 %v176, %v128
    %v178 = vadd.f32 %v177, %v131
    %v179 = vadd.f32 %v178, %v134
    %v180 = vadd.f32 %v179, %v137
    %v181 = vadd.f32 %v180, %v140
    %v182 = vadd.f32 %v181, %v143
    %v183 = vadd.f32 %v182, %v146
    %v184 = vrot.slane %v183, 4
    %v185 = vadd.f32 %v183, %v184
    %v186 = vrot.slane %v185, 2
    %v187 = vadd.f32 %v185, %v186
    %v188 = vrot.slane %v187, 1
    %v189 = vadd.f32 %v187, %v188
    %v190 = vadd.f32 %v102, %v105
    %v191 = vadd.f32 %v190, %v108
    %v192 = vadd.f32 %v191, %v111
    %v193 = vadd.f32 %v192, %v114
    %v194 = vadd.f32 %v193, %v117
    %v195 = vadd.f32 %v194, %v120
    %v196 = vadd.f32 %v195, %v123
    %v197 = vadd.f32 %v196, %v126
    %v198 = vadd.f32 %v197, %v129
    %v199 = vadd.f32 %v198, %v132
    %v200 = vadd.f32 %v199, %v135
    %v201 = vadd.f32 %v200, %v138
    %v202 = vadd.f32 %v201, %v141
    %v203 = vadd.f32 %v202, %v144
    %v204 = vadd.f32 %v203, %v147
    %v205 = vrot.slane %v204, 4
    %v206 = vadd.f32 %v204, %v205
    %v207 = vrot.slane %v206, 2
    %v208 = vadd.f32 %v206, %v207
    %v209 = vrot.slane %v208, 1
    %v210 = vadd.f32 %v208, %v209
    %v211 = vmax.f32 %v168, 1e-24
    %v212 = vmax.f32 %v189, 1e-24
    %v213 = vmax.f32 %v210, 1e-24
    %v214 = vrsqrt.pop %v211
    %v215 = vrsqrt.pop %v212
    %v216 = vrsqrt.pop %v213
    %217 = vmatprep.subr.mxu0 %v92
    %218 = vmatpush1.msra.mxu0 %v91
    %219 = vmatprep.subr.mxu0 %v89
    %220 = vmatpush1.msra.mxu0 %v88
    %221 = vmatprep.subr.mxu0 %v86
    %222 = vmatpush1.msra.mxu0 %v85
    %223 = vmatprep.subr.mxu0 %v83
    %224 = vmatpush1.msra.mxu0 %v82
    %225 = vmatprep.subr.mxu0 %v80
    %226 = vmatpush1.msra.mxu0 %v79
    %227 = vmatprep.subr.mxu0 %v77
    %228 = vmatpush1.msra.mxu0 %v76
    %229 = vmatprep.subr.mxu0 %v74
    %230 = vmatpush1.msra.mxu0 %v73
    %231 = vmatprep.subr.mxu0 %v71
    %232 = vmatpush1.msra.mxu0 %v70
    %233 = vmatprep.subr.mxu0 %v68
    %234 = vmatpush1.msra.mxu0 %v67
    %235 = vmatprep.subr.mxu0 %v65
    %236 = vmatpush1.msra.mxu0 %v64
    %237 = vmatprep.subr.mxu0 %v62
    %238 = vmatpush1.msra.mxu0 %v61
    %239 = vmatprep.subr.mxu0 %v59
    %240 = vmatpush1.msra.mxu0 %v58
    %241 = vmatprep.subr.mxu0 %v56
    %242 = vmatpush1.msra.mxu0 %v55
    %243 = vmatprep.subr.mxu0 %v53
    %244 = vmatpush1.msra.mxu0 %v52
    %245 = vmatprep.subr.mxu0 %v50
    %246 = vmatpush1.msra.mxu0 %v49
    %247 = vmatprep.subr.mxu0 %v47
    %248 = vmatpush1.msra.mxu0 %v46
    %249 = vmatprep.subr.mxu0 0.0
    %250 = vmatpush2.msra.mxu0 0.0
    %251 = vmatprep.subr.mxu0 0.0
    %252 = vmatpush2.msra.mxu0 0.0
    %253 = vmatprep.subr.mxu0 0.0
    %254 = vmatpush2.msra.mxu0 0.0
    %255 = vmatprep.subr.mxu0 0.0
    %256 = vmatpush2.msra.mxu0 0.0
    %257 = vmatprep.subr.mxu0 0.0
    %258 = vmatpush2.msra.mxu0 0.0
    %259 = vmatprep.subr.mxu0 0.0
    %260 = vmatpush2.msra.mxu0 0.0
    %261 = vmatprep.subr.mxu0 0.0
    %262 = vmatpush2.msra.mxu0 0.0
    %263 = vmatprep.subr.mxu0 0.0
    %264 = vmatpush2.msra.mxu0 0.0
    %265 = vmatprep.subr.mxu0 0.0
    %266 = vmatpush2.msra.mxu0 0.0
    %267 = vmatprep.subr.mxu0 0.0
    %268 = vmatpush2.msra.mxu0 0.0
    %269 = vmatprep.subr.mxu0 0.0
    %270 = vmatpush2.msra.mxu0 0.0
    %271 = vmatprep.subr.mxu0 0.0
    %272 = vmatpush2.msra.mxu0 0.0
    %273 = vmatprep.subr.mxu0 0.0
    %274 = vmatpush2.msra.mxu0 0.0
    %275 = vmatprep.subr.mxu0 0.0
    %276 = vmatpush2.msra.mxu0 0.0
    %277 = vmatprep.subr.mxu0 0.0
    %278 = vmatpush2.msra.mxu0 0.0
    %279 = vmatprep.subr.mxu0 0.0
    %280 = vmatpush2.msra.mxu0 0.0
    %281 = vmatprep.mubr.f32.mxu0 0.0
    %282 = vmatmul.mubr.f32.gmra.mxu0 %v94
    %v283 = vpop.f32.mrf.mxu0
    %v284 = vadd.f32 0.0, %v283
    %v285 = vpop.f32.mrf.mxu0
    %v286 = vadd.f32 0.0, %v285
    %287 = vmatprep.mubr.f32.mxu0 0.0
    %288 = vmatmul.mubr.f32.gmra.mxu0 %v95
    %v289 = vpop.f32.mrf.mxu0
    %v290 = vadd.f32 0.0, %v289
    %v291 = vpop.f32.mrf.mxu0
    %v292 = vadd.f32 0.0, %v291
    %293 = vdwg.mxu0
    %294 = vmatprep.subr.mxu0 0.0
    %295 = vmatpush1.msra.mxu0 %v93
    %296 = vmatprep.subr.mxu0 0.0
    %297 = vmatpush1.msra.mxu0 %v90
    %298 = vmatprep.subr.mxu0 0.0
    %299 = vmatpush1.msra.mxu0 %v87
    %300 = vmatprep.subr.mxu0 0.0
    %301 = vmatpush1.msra.mxu0 %v84
    %302 = vmatprep.subr.mxu0 0.0
    %303 = vmatpush1.msra.mxu0 %v81
    %304 = vmatprep.subr.mxu0 0.0
    %305 = vmatpush1.msra.mxu0 %v78
    %306 = vmatprep.subr.mxu0 0.0
    %307 = vmatpush1.msra.mxu0 %v75
    %308 = vmatprep.subr.mxu0 0.0
    %309 = vmatpush1.msra.mxu0 %v72
    %310 = vmatprep.subr.mxu0 0.0
    %311 = vmatpush1.msra.mxu0 %v69
    %312 = vmatprep.subr.mxu0 0.0
    %313 = vmatpush1.msra.mxu0 %v66
    %314 = vmatprep.subr.mxu0 0.0
    %315 = vmatpush1.msra.mxu0 %v63
    %316 = vmatprep.subr.mxu0 0.0
    %317 = vmatpush1.msra.mxu0 %v60
    %318 = vmatprep.subr.mxu0 0.0
    %319 = vmatpush1.msra.mxu0 %v57
    %320 = vmatprep.subr.mxu0 0.0
    %321 = vmatpush1.msra.mxu0 %v54
    %322 = vmatprep.subr.mxu0 0.0
    %323 = vmatpush1.msra.mxu0 %v51
    %324 = vmatprep.subr.mxu0 0.0
    %325 = vmatpush1.msra.mxu0 %v48
    %326 = vmatprep.subr.mxu0 0.0
    %327 = vmatpush2.msra.mxu0 0.0
    %328 = vmatprep.subr.mxu0 0.0
    %329 = vmatpush2.msra.mxu0 0.0
    %330 = vmatprep.subr.mxu0 0.0
    %331 = vmatpush2.msra.mxu0 0.0
    %332 = vmatprep.subr.mxu0 0.0
    %333 = vmatpush2.msra.mxu0 0.0
    %334 = vmatprep.subr.mxu0 0.0
    %335 = vmatpush2.msra.mxu0 0.0
    %336 = vmatprep.subr.mxu0 0.0
    %337 = vmatpush2.msra.mxu0 0.0
    %338 = vmatprep.subr.mxu0 0.0
    %339 = vmatpush2.msra.mxu0 0.0
    %340 = vmatprep.subr.mxu0 0.0
    %341 = vmatpush2.msra.mxu0 0.0
    %342 = vmatprep.subr.mxu0 0.0
    %343 = vmatpush2.msra.mxu0 0.0
    %344 = vmatprep.subr.mxu0 0.0
    %345 = vmatpush2.msra.mxu0 0.0
    %346 = vmatprep.subr.mxu0 0.0
    %347 = vmatpush2.msra.mxu0 0.0
    %348 = vmatprep.subr.mxu0 0.0
    %349 = vmatpush2.msra.mxu0 0.0
    %350 = vmatprep.subr.mxu0 0.0
    %351 = vmatpush2.msra.mxu0 0.0
    %352 = vmatprep.subr.mxu0 0.0
    %353 = vmatpush2.msra.mxu0 0.0
    %354 = vmatprep.subr.mxu0 0.0
    %355 = vmatpush2.msra.mxu0 0.0
    %356 = vmatprep.subr.mxu0 0.0
    %357 = vmatpush2.msra.mxu0 0.0
    %358 = vmatprep.mubr.f32.mxu0 0.0
    %359 = vmatmul.mubr.f32.gmra.mxu0 %v94
    %v360 = vpop.f32.mrf.mxu0
    %v361 = vadd.f32 0.0, %v360
    %v362 = vpop.f32.mrf.mxu0
    %363 = vmatprep.mubr.f32.mxu0 0.0
    %364 = vmatmul.mubr.f32.gmra.mxu0 %v95
    %v365 = vpop.f32.mrf.mxu0
    %v366 = vadd.f32 0.0, %v365
    %v367 = vpop.f32.mrf.mxu0
    %368 = vdwg.mxu0
    %v369 = vmul.f32 %v284, %v214
    %v370 = vmul.f32 %v286, %v215
    %v371 = vmul.f32 %v361, %v216
    %v372 = vmul.f32 %v290, %v214
    %v373 = vmul.f32 %v292, %v215
    %v374 = vmul.f32 %v366, %v216
    %376 = vset.pattern.permute.xlu0 0
    %377 = vperm.xlu0 %376, %v96
    %v378 = vpop.permute.xlu0 %377
    %381 = vset.pattern.permute.xlu0 0
    %382 = vperm.xlu0 %381, %v97
    %v383 = vpop.permute.xlu0 %382
    %v385 = vadd.f32 %v369, %v378
    %v386 = vadd.f32 %v370, %v378
    %v387 = vadd.f32 %v371, %v378
    %v388 = vadd.f32 %v372, %v383
    %v389 = vadd.f32 %v373, %v383
    %v390 = vadd.f32 %v374, %v383
    %v391 = vmax.f32 %v385, %v388
    %v392 = vrot.slane %v391, 4
    %v393 = vmax.f32 %v391, %v392
    %v394 = vrot.slane %v393, 2
    %v395 = vmax.f32 %v393, %v394
    %v396 = vrot.slane %v395, 1
    %v397 = vmax.f32 %v395, %v396
    %v398 = vmax.f32 %v386, %v389
    %v399 = vrot.slane %v398, 4
    %v400 = vmax.f32 %v398, %v399
    %v401 = vrot.slane %v400, 2
    %v402 = vmax.f32 %v400, %v401
    %v403 = vrot.slane %v402, 1
    %v404 = vmax.f32 %v402, %v403
    %v405 = vmax.f32 %v387, %v390
    %v406 = vrot.slane %v405, 4
    %v407 = vmax.f32 %v405, %v406
    %v408 = vrot.slane %v407, 2
    %v409 = vmax.f32 %v407, %v408
    %v410 = vrot.slane %v409, 1
    %v411 = vmax.f32 %v409, %v410
    %v412 = vsub.f32 %v385, %v397
    %v413 = vsub.f32 %v386, %v404
    %v414 = vsub.f32 %v387, %v411
    %v415 = vsub.f32 %v388, %v397
    %v416 = vsub.f32 %v389, %v404
    %v417 = vsub.f32 %v390, %v411
    %v418 = vmul.f32 %v412, 1.442695
    %v419 = vpow.pop %v418
    %v420 = vmul.f32 %v413, 1.442695
    %v421 = vpow.pop %v420
    %v422 = vmul.f32 %v414, 1.442695
    %v423 = vpow.pop %v422
    %v424 = vmul.f32 %v415, 1.442695
    %v425 = vpow.pop %v424
    %v426 = vmul.f32 %v416, 1.442695
    %v427 = vpow.pop %v426
    %v428 = vmul.f32 %v417, 1.442695
    %v429 = vpow.pop %v428
    %v430 = vadd.f32 %v419, %v425
    %v431 = vrot.slane %v430, 4
    %v432 = vadd.f32 %v430, %v431
    %v433 = vrot.slane %v432, 2
    %v434 = vadd.f32 %v432, %v433
    %v435 = vrot.slane %v434, 1
    %v436 = vadd.f32 %v434, %v435
    %v437 = vadd.f32 %v421, %v427
    %v438 = vrot.slane %v437, 4
    %v439 = vadd.f32 %v437, %v438
    %v440 = vrot.slane %v439, 2
    %v441 = vadd.f32 %v439, %v440
    %v442 = vrot.slane %v441, 1
    %v443 = vadd.f32 %v441, %v442
    %v444 = vadd.f32 %v423, %v429
    %v445 = vrot.slane %v444, 4
    %v446 = vadd.f32 %v444, %v445
    %v447 = vrot.slane %v446, 2
    %v448 = vadd.f32 %v446, %v447
    %v449 = vrot.slane %v448, 1
    %v450 = vadd.f32 %v448, %v449
    %v451 = vrcp.pop %v436
    %v452 = vrcp.pop %v443
    %v453 = vrcp.pop %v450
    %v454 = vmul.f32 %v419, %v451
    %v455 = vmul.f32 %v421, %v452
    %v456 = vmul.f32 %v423, %v453
    %v457 = vmul.f32 %v425, %v451
    %v458 = vmul.f32 %v427, %v452
    %v459 = vmul.f32 %v429, %v453
    %vm460 = vcmask 523264
    %v461 = vsel %vm460, %v454, 0.0
    %462 = vadd.xlane.f32.xlu0 %v461
    %v463 = vpop.xlane.xlu0 %462
    %v464 = vsel %vm460, %v457, 0.0
    %465 = vadd.xlane.f32.xlu0 %v464
    %v466 = vpop.xlane.xlu0 %465
    %v467 = vmul.f32 %v454, %v214
    %v468 = vmul.f32 %v457, %v214
    %v470 = vsel %vm460, %v467, 0
    %v473 = vsel %vm460, %v468, 0
    %v476 = vsel %vm460, %v46, 0
    %v479 = vsel %vm460, %v49, 0
    %v482 = vsel %vm460, %v52, 0
    %v485 = vsel %vm460, %v55, 0
    %v488 = vsel %vm460, %v58, 0
    %v491 = vsel %vm460, %v61, 0
    %v494 = vsel %vm460, %v64, 0
    %v497 = vsel %vm460, %v67, 0
    %v500 = vsel %vm460, %v70, 0
    %v503 = vsel %vm460, %v73, 0
    %v506 = vsel %vm460, %v76, 0
    %v509 = vsel %vm460, %v79, 0
    %v512 = vsel %vm460, %v82, 0
    %v515 = vsel %vm460, %v85, 0
    %v518 = vsel %vm460, %v88, 0
    %v521 = vsel %vm460, %v91, 0
    %523 = vmatprep.subr.mxu0 0.0
    %524 = vmatpush1.xpose.msra.mxu0 %v521
    %525 = vmatprep.subr.mxu0 0.0
    %526 = vmatpush1.xpose.msra.mxu0 %v518
    %527 = vmatprep.subr.mxu0 0.0
    %528 = vmatpush1.xpose.msra.mxu0 %v515
    %529 = vmatprep.subr.mxu0 0.0
    %530 = vmatpush1.xpose.msra.mxu0 %v512
    %531 = vmatprep.subr.mxu0 0.0
    %532 = vmatpush1.xpose.msra.mxu0 %v509
    %533 = vmatprep.subr.mxu0 0.0
    %534 = vmatpush1.xpose.msra.mxu0 %v506
    %535 = vmatprep.subr.mxu0 0.0
    %536 = vmatpush1.xpose.msra.mxu0 %v503
    %537 = vmatprep.subr.mxu0 0.0
    %538 = vmatpush1.xpose.msra.mxu0 %v500
    %539 = vmatprep.subr.mxu0 0.0
    %540 = vmatpush1.xpose.msra.mxu0 %v497
    %541 = vmatprep.subr.mxu0 0.0
    %542 = vmatpush1.xpose.msra.mxu0 %v494
    %543 = vmatprep.subr.mxu0 0.0
    %544 = vmatpush1.xpose.msra.mxu0 %v491
    %545 = vmatprep.subr.mxu0 0.0
    %546 = vmatpush1.xpose.msra.mxu0 %v488
    %547 = vmatprep.subr.mxu0 0.0
    %548 = vmatpush1.xpose.msra.mxu0 %v485
    %549 = vmatprep.subr.mxu0 0.0
    %550 = vmatpush1.xpose.msra.mxu0 %v482
    %551 = vmatprep.subr.mxu0 0.0
    %552 = vmatpush1.xpose.msra.mxu0 %v479
    %553 = vmatprep.subr.mxu0 0.0
    %554 = vmatpush1.xpose.msra.mxu0 %v476
    %555 = vmatprep.subr.mxu0 0.0
    %556 = vmatpush2.xpose.msra.mxu0 0.0
    %557 = vmatprep.subr.mxu0 0.0
    %558 = vmatpush2.xpose.msra.mxu0 0.0
    %559 = vmatprep.subr.mxu0 0.0
    %560 = vmatpush2.xpose.msra.mxu0 0.0
    %561 = vmatprep.subr.mxu0 0.0
    %562 = vmatpush2.xpose.msra.mxu0 0.0
    %563 = vmatprep.subr.mxu0 0.0
    %564 = vmatpush2.xpose.msra.mxu0 0.0
    %565 = vmatprep.subr.mxu0 0.0
    %566 = vmatpush2.xpose.msra.mxu0 0.0
    %567 = vmatprep.subr.mxu0 0.0
    %568 = vmatpush2.xpose.msra.mxu0 0.0
    %569 = vmatprep.subr.mxu0 0.0
    %570 = vmatpush2.xpose.msra.mxu0 0.0
    %571 = vmatprep.subr.mxu0 0.0
    %572 = vmatpush2.xpose.msra.mxu0 0.0
    %573 = vmatprep.subr.mxu0 0.0
    %574 = vmatpush2.xpose.msra.mxu0 0.0
    %575 = vmatprep.subr.mxu0 0.0
    %576 = vmatpush2.xpose.msra.mxu0 0.0
    %577 = vmatprep.subr.mxu0 0.0
    %578 = vmatpush2.xpose.msra.mxu0 0.0
    %579 = vmatprep.subr.mxu0 0.0
    %580 = vmatpush2.xpose.msra.mxu0 0.0
    %581 = vmatprep.subr.mxu0 0.0
    %582 = vmatpush2.xpose.msra.mxu0 0.0
    %583 = vmatprep.subr.mxu0 0.0
    %584 = vmatpush2.xpose.msra.mxu0 0.0
    %585 = vmatprep.subr.mxu0 0.0
    %586 = vmatpush2.xpose.msra.mxu0 0.0
    %587 = vmatprep.mubr.f32.mxu0 0.0
    %588 = vmatmul.mubr.f32.gmra.mxu0 %v470
    %v589 = vpop.f32.mrf.mxu0
    %v590 = vadd.f32 0.0, %v589
    %v591 = vpop.f32.mrf.mxu0
    %592 = vmatprep.mubr.f32.mxu0 0.0
    %593 = vmatmul.mubr.f32.gmra.mxu0 %v473
    %v594 = vpop.f32.mrf.mxu0
    %v595 = vadd.f32 0.0, %v594
    %v596 = vpop.f32.mrf.mxu0
    %597 = vdwg.mxu0
    %v598 = vmul.f32 %v98, %v463
    %v599 = vmul.f32 %v99, %v466
    %v600 = vsub.f32 %v590, %v598
    %v601 = vsub.f32 %v595, %v599
    %v602 = vmul.f32 %v600, %v600
    %v603 = vmul.f32 %v601, %v601
    %604 = vadd.xlane.f32.xlu0 %v602
    %v605 = vpop.xlane.xlu0 %604
    %606 = vadd.xlane.f32.xlu0 %v603
    %v607 = vpop.xlane.xlu0 %606
    %v608 = vmax.f32 %v605, 1e-24
    %v609 = vmax.f32 %v607, 1e-24
    %v610 = vrsqrt.pop %v608
    %v611 = vrsqrt.pop %v609
    %v612 = vmul.f32 %v610, %v610
    %v613 = vmul.f32 %v611, %v611
    %v614 = vmul.f32 %v605, %v612
    %v615 = vmul.f32 %v607, %v613
    %vm616 = vcmask 7168
    %v617 = vsel %vm616, %v614, 0.0
    %v618 = vsel %vm616, %v615, 0.0
    %v619 = vadd.f32 %v617, %v618
    %620 = vadd.xlane.f32.xlu0 %v619
    %v621 = vpop.xlane.xlu0 %620
    %v622 = vrot.slane %v621, 4
    %v623 = vadd.f32 %v621, %v622
    %v624 = vrot.slane %v623, 2
    %v625 = vadd.f32 %v623, %v624
    %v626 = vrot.slane %v625, 1
    %v627 = vadd.f32 %v625, %v626
    %s628 = vtos %v627
    %s629 = smax.f32 %s628, 1e-24
    %v630 = vstv %s629
    %v631 = vrsqrt.pop %v630
    %s632 = vtos %v631
    %v633 = vstv %s632
    %v634 = vmul.f32 %v610, %v633
    %v635 = vmul.f32 %v611, %v633
    %v636 = vmul.f32 %v600, %v634
    %v637 = vmul.f32 %v601, %v635
    %638 = vst [vmem:[#allocation7] sm:$0xff] %v636
    %639 = vst [vmem:[#allocation7 + $0x8] sm:$0xff] %v637
    %642 = vrot.lane.b32.xlu0 %v454, 64
    %v643 = vpop.permute.xlu0 %642
    %644 = vrot.lane.b32.xlu0 %v457, 64
    %v645 = vpop.permute.xlu0 %644
    %v648 = vsel %vm460, %v643, 0.0
    %649 = vadd.xlane.f32.xlu0 %v648
    %v650 = vpop.xlane.xlu0 %649
    %v651 = vsel %vm460, %v645, 0.0
    %652 = vadd.xlane.f32.xlu0 %v651
    %v653 = vpop.xlane.xlu0 %652
    %654 = vrot.lane.b32.xlu0 %v467, 64
    %v655 = vpop.permute.xlu0 %654
    %656 = vrot.lane.b32.xlu0 %v468, 64
    %v657 = vpop.permute.xlu0 %656
    %658 = vrot.lane.b32.xlu0 %v46, 64
    %v659 = vpop.permute.xlu0 %658
    %660 = vrot.lane.b32.xlu0 %v49, 64
    %v661 = vpop.permute.xlu0 %660
    %662 = vrot.lane.b32.xlu0 %v52, 64
    %v663 = vpop.permute.xlu0 %662
    %664 = vrot.lane.b32.xlu0 %v55, 64
    %v665 = vpop.permute.xlu0 %664
    %666 = vrot.lane.b32.xlu0 %v58, 64
    %v667 = vpop.permute.xlu0 %666
    %668 = vrot.lane.b32.xlu0 %v61, 64
    %v669 = vpop.permute.xlu0 %668
    %670 = vrot.lane.b32.xlu0 %v64, 64
    %v671 = vpop.permute.xlu0 %670
    %672 = vrot.lane.b32.xlu0 %v67, 64
    %v673 = vpop.permute.xlu0 %672
    %674 = vrot.lane.b32.xlu0 %v70, 64
    %v675 = vpop.permute.xlu0 %674
    %676 = vrot.lane.b32.xlu0 %v73, 64
    %v677 = vpop.permute.xlu0 %676
    %678 = vrot.lane.b32.xlu0 %v76, 64
    %v679 = vpop.permute.xlu0 %678
    %680 = vrot.lane.b32.xlu0 %v79, 64
    %v681 = vpop.permute.xlu0 %680
    %682 = vrot.lane.b32.xlu0 %v82, 64
    %v683 = vpop.permute.xlu0 %682
    %684 = vrot.lane.b32.xlu0 %v85, 64
    %v685 = vpop.permute.xlu0 %684
    %686 = vrot.lane.b32.xlu0 %v88, 64
    %v687 = vpop.permute.xlu0 %686
    %688 = vrot.lane.b32.xlu0 %v91, 64
    %v689 = vpop.permute.xlu0 %688
    %v690 = vsel %vm460, %v655, 0
    %v692 = vsel %vm460, %v657, 0
    %v694 = vsel %vm460, %v659, 0
    %v696 = vsel %vm460, %v661, 0
    %v698 = vsel %vm460, %v663, 0
    %v700 = vsel %vm460, %v665, 0
    %v702 = vsel %vm460, %v667, 0
    %v704 = vsel %vm460, %v669, 0
    %v706 = vsel %vm460, %v671, 0
    %v708 = vsel %vm460, %v673, 0
    %v710 = vsel %vm460, %v675, 0
    %v712 = vsel %vm460, %v677, 0
    %v714 = vsel %vm460, %v679, 0
    %v716 = vsel %vm460, %v681, 0
    %v718 = vsel %vm460, %v683, 0
    %v720 = vsel %vm460, %v685, 0
    %v722 = vsel %vm460, %v687, 0
    %v724 = vsel %vm460, %v689, 0
    %726 = vmatprep.subr.mxu0 0.0
    %727 = vmatpush1.xpose.msra.mxu0 %v724
    %728 = vmatprep.subr.mxu0 0.0
    %729 = vmatpush1.xpose.msra.mxu0 %v722
    %730 = vmatprep.subr.mxu0 0.0
    %731 = vmatpush1.xpose.msra.mxu0 %v720
    %732 = vmatprep.subr.mxu0 0.0
    %733 = vmatpush1.xpose.msra.mxu0 %v718
    %734 = vmatprep.subr.mxu0 0.0
    %735 = vmatpush1.xpose.msra.mxu0 %v716
    %736 = vmatprep.subr.mxu0 0.0
    %737 = vmatpush1.xpose.msra.mxu0 %v714
    %738 = vmatprep.subr.mxu0 0.0
    %739 = vmatpush1.xpose.msra.mxu0 %v712
    %740 = vmatprep.subr.mxu0 0.0
    %741 = vmatpush1.xpose.msra.mxu0 %v710
    %742 = vmatprep.subr.mxu0 0.0
    %743 = vmatpush1.xpose.msra.mxu0 %v708
    %744 = vmatprep.subr.mxu0 0.0
    %745 = vmatpush1.xpose.msra.mxu0 %v706
    %746 = vmatprep.subr.mxu0 0.0
    %747 = vmatpush1.xpose.msra.mxu0 %v704
    %748 = vmatprep.subr.mxu0 0.0
    %749 = vmatpush1.xpose.msra.mxu0 %v702
    %750 = vmatprep.subr.mxu0 0.0
    %751 = vmatpush1.xpose.msra.mxu0 %v700
    %752 = vmatprep.subr.mxu0 0.0
    %753 = vmatpush1.xpose.msra.mxu0 %v698
    %754 = vmatprep.subr.mxu0 0.0
    %755 = vmatpush1.xpose.msra.mxu0 %v696
    %756 = vmatprep.subr.mxu0 0.0
    %757 = vmatpush1.xpose.msra.mxu0 %v694
    %758 = vmatprep.subr.mxu0 0.0
    %759 = vmatpush2.xpose.msra.mxu0 0.0
    %760 = vmatprep.subr.mxu0 0.0
    %761 = vmatpush2.xpose.msra.mxu0 0.0
    %762 = vmatprep.subr.mxu0 0.0
    %763 = vmatpush2.xpose.msra.mxu0 0.0
    %764 = vmatprep.subr.mxu0 0.0
    %765 = vmatpush2.xpose.msra.mxu0 0.0
    %766 = vmatprep.subr.mxu0 0.0
    %767 = vmatpush2.xpose.msra.mxu0 0.0
    %768 = vmatprep.subr.mxu0 0.0
    %769 = vmatpush2.xpose.msra.mxu0 0.0
    %770 = vmatprep.subr.mxu0 0.0
    %771 = vmatpush2.xpose.msra.mxu0 0.0
    %772 = vmatprep.subr.mxu0 0.0
    %773 = vmatpush2.xpose.msra.mxu0 0.0
    %774 = vmatprep.subr.mxu0 0.0
    %775 = vmatpush2.xpose.msra.mxu0 0.0
    %776 = vmatprep.subr.mxu0 0.0
    %777 = vmatpush2.xpose.msra.mxu0 0.0
    %778 = vmatprep.subr.mxu0 0.0
    %779 = vmatpush2.xpose.msra.mxu0 0.0
    %780 = vmatprep.subr.mxu0 0.0
    %781 = vmatpush2.xpose.msra.mxu0 0.0
    %782 = vmatprep.subr.mxu0 0.0
    %783 = vmatpush2.xpose.msra.mxu0 0.0
    %784 = vmatprep.subr.mxu0 0.0
    %785 = vmatpush2.xpose.msra.mxu0 0.0
    %786 = vmatprep.subr.mxu0 0.0
    %787 = vmatpush2.xpose.msra.mxu0 0.0
    %788 = vmatprep.subr.mxu0 0.0
    %789 = vmatpush2.xpose.msra.mxu0 0.0
    %790 = vmatprep.mubr.f32.mxu0 0.0
    %791 = vmatmul.mubr.f32.gmra.mxu0 %v690
    %v792 = vpop.f32.mrf.mxu0
    %v793 = vadd.f32 0.0, %v792
    %v794 = vpop.f32.mrf.mxu0
    %795 = vmatprep.mubr.f32.mxu0 0.0
    %796 = vmatmul.mubr.f32.gmra.mxu0 %v692
    %v797 = vpop.f32.mrf.mxu0
    %v798 = vadd.f32 0.0, %v797
    %v799 = vpop.f32.mrf.mxu0
    %800 = vdwg.mxu0
    %v801 = vmul.f32 %v98, %v650
    %v802 = vmul.f32 %v99, %v653
    %v803 = vsub.f32 %v793, %v801
    %v804 = vsub.f32 %v798, %v802
    %v805 = vmul.f32 %v803, %v803
    %v806 = vmul.f32 %v804, %v804
    %807 = vadd.xlane.f32.xlu0 %v805
    %v808 = vpop.xlane.xlu0 %807
    %809 = vadd.xlane.f32.xlu0 %v806
    %v810 = vpop.xlane.xlu0 %809
    %v811 = vmax.f32 %v808, 1e-24
    %v812 = vmax.f32 %v810, 1e-24
    %v813 = vrsqrt.pop %v811
    %v814 = vrsqrt.pop %v812
    %v815 = vmul.f32 %v813, %v813
    %v816 = vmul.f32 %v814, %v814
    %v817 = vmul.f32 %v808, %v815
    %v818 = vmul.f32 %v810, %v816
    %v819 = vsel %vm616, %v817, 0.0
    %v820 = vsel %vm616, %v818, 0.0
    %v821 = vadd.f32 %v819, %v820
    %822 = vadd.xlane.f32.xlu0 %v821
    %v823 = vpop.xlane.xlu0 %822
    %v824 = vrot.slane %v823, 4
    %v825 = vadd.f32 %v823, %v824
    %v826 = vrot.slane %v825, 2
    %v827 = vadd.f32 %v825, %v826
    %v828 = vrot.slane %v827, 1
    %v829 = vadd.f32 %v827, %v828
    %s830 = vtos %v829
    %s831 = smax.f32 %s830, 1e-24
    %v832 = vstv %s831
    %v833 = vrsqrt.pop %v832
    %s834 = vtos %v833
    %v835 = vstv %s834
    %v836 = vmul.f32 %v813, %v835
    %v837 = vmul.f32 %v814, %v835
    %v838 = vmul.f32 %v803, %v836
    %v839 = vmul.f32 %v804, %v837
    %s840 = scalar_lea.vmem [#allocation7], 16
    %841 = vst [vmem:[%s840] sm:$0xff] %v838
    %842 = vst [vmem:[%s840 + $0x8] sm:$0xff] %v839
    %v843 = vsel %vm460, %v455, 0.0
    %844 = vadd.xlane.f32.xlu0 %v843
    %v845 = vpop.xlane.xlu0 %844
    %v846 = vsel %vm460, %v458, 0.0
    %847 = vadd.xlane.f32.xlu0 %v846
    %v848 = vpop.xlane.xlu0 %847
    %v849 = vmul.f32 %v455, %v215
    %v850 = vmul.f32 %v458, %v215
    %v852 = vsel %vm460, %v849, 0
    %v855 = vsel %vm460, %v850, 0
    %v858 = vsel %vm460, %v47, 0
    %v861 = vsel %vm460, %v50, 0
    %v864 = vsel %vm460, %v53, 0
    %v867 = vsel %vm460, %v56, 0
    %v870 = vsel %vm460, %v59, 0
    %v873 = vsel %vm460, %v62, 0
    %v876 = vsel %vm460, %v65, 0
    %v879 = vsel %vm460, %v68, 0
    %v882 = vsel %vm460, %v71, 0
    %v885 = vsel %vm460, %v74, 0
    %v888 = vsel %vm460, %v77, 0
    %v891 = vsel %vm460, %v80, 0
    %v894 = vsel %vm460, %v83, 0
    %v897 = vsel %vm460, %v86, 0
    %v900 = vsel %vm460, %v89, 0
    %v903 = vsel %vm460, %v92, 0
    %905 = vmatprep.subr.mxu0 0.0
    %906 = vmatpush1.xpose.msra.mxu0 %v903
    %907 = vmatprep.subr.mxu0 0.0
    %908 = vmatpush1.xpose.msra.mxu0 %v900
    %909 = vmatprep.subr.mxu0 0.0
    %910 = vmatpush1.xpose.msra.mxu0 %v897
    %911 = vmatprep.subr.mxu0 0.0
    %912 = vmatpush1.xpose.msra.mxu0 %v894
    %913 = vmatprep.subr.mxu0 0.0
    %914 = vmatpush1.xpose.msra.mxu0 %v891
    %915 = vmatprep.subr.mxu0 0.0
    %916 = vmatpush1.xpose.msra.mxu0 %v888
    %917 = vmatprep.subr.mxu0 0.0
    %918 = vmatpush1.xpose.msra.mxu0 %v885
    %919 = vmatprep.subr.mxu0 0.0
    %920 = vmatpush1.xpose.msra.mxu0 %v882
    %921 = vmatprep.subr.mxu0 0.0
    %922 = vmatpush1.xpose.msra.mxu0 %v879
    %923 = vmatprep.subr.mxu0 0.0
    %924 = vmatpush1.xpose.msra.mxu0 %v876
    %925 = vmatprep.subr.mxu0 0.0
    %926 = vmatpush1.xpose.msra.mxu0 %v873
    %927 = vmatprep.subr.mxu0 0.0
    %928 = vmatpush1.xpose.msra.mxu0 %v870
    %929 = vmatprep.subr.mxu0 0.0
    %930 = vmatpush1.xpose.msra.mxu0 %v867
    %931 = vmatprep.subr.mxu0 0.0
    %932 = vmatpush1.xpose.msra.mxu0 %v864
    %933 = vmatprep.subr.mxu0 0.0
    %934 = vmatpush1.xpose.msra.mxu0 %v861
    %935 = vmatprep.subr.mxu0 0.0
    %936 = vmatpush1.xpose.msra.mxu0 %v858
    %937 = vmatprep.subr.mxu0 0.0
    %938 = vmatpush2.xpose.msra.mxu0 0.0
    %939 = vmatprep.subr.mxu0 0.0
    %940 = vmatpush2.xpose.msra.mxu0 0.0
    %941 = vmatprep.subr.mxu0 0.0
    %942 = vmatpush2.xpose.msra.mxu0 0.0
    %943 = vmatprep.subr.mxu0 0.0
    %944 = vmatpush2.xpose.msra.mxu0 0.0
    %945 = vmatprep.subr.mxu0 0.0
    %946 = vmatpush2.xpose.msra.mxu0 0.0
    %947 = vmatprep.subr.mxu0 0.0
    %948 = vmatpush2.xpose.msra.mxu0 0.0
    %949 = vmatprep.subr.mxu0 0.0
    %950 = vmatpush2.xpose.msra.mxu0 0.0
    %951 = vmatprep.subr.mxu0 0.0
    %952 = vmatpush2.xpose.msra.mxu0 0.0
    %953 = vmatprep.subr.mxu0 0.0
    %954 = vmatpush2.xpose.msra.mxu0 0.0
    %955 = vmatprep.subr.mxu0 0.0
    %956 = vmatpush2.xpose.msra.mxu0 0.0
    %957 = vmatprep.subr.mxu0 0.0
    %958 = vmatpush2.xpose.msra.mxu0 0.0
    %959 = vmatprep.subr.mxu0 0.0
    %960 = vmatpush2.xpose.msra.mxu0 0.0
    %961 = vmatprep.subr.mxu0 0.0
    %962 = vmatpush2.xpose.msra.mxu0 0.0
    %963 = vmatprep.subr.mxu0 0.0
    %964 = vmatpush2.xpose.msra.mxu0 0.0
    %965 = vmatprep.subr.mxu0 0.0
    %966 = vmatpush2.xpose.msra.mxu0 0.0
    %967 = vmatprep.subr.mxu0 0.0
    %968 = vmatpush2.xpose.msra.mxu0 0.0
    %969 = vmatprep.mubr.f32.mxu0 0.0
    %970 = vmatmul.mubr.f32.gmra.mxu0 %v852
    %v971 = vpop.f32.mrf.mxu0
    %v972 = vadd.f32 0.0, %v971
    %v973 = vpop.f32.mrf.mxu0
    %974 = vmatprep.mubr.f32.mxu0 0.0
    %975 = vmatmul.mubr.f32.gmra.mxu0 %v855
    %v976 = vpop.f32.mrf.mxu0
    %v977 = vadd.f32 0.0, %v976
    %v978 = vpop.f32.mrf.mxu0
    %979 = vdwg.mxu0
    %v980 = vmul.f32 %v98, %v845
    %v981 = vmul.f32 %v99, %v848
    %v982 = vsub.f32 %v972, %v980
    %v983 = vsub.f32 %v977, %v981
    %v984 = vmul.f32 %v982, %v982
    %v985 = vmul.f32 %v983, %v983
    %986 = vadd.xlane.f32.xlu0 %v984
    %v987 = vpop.xlane.xlu0 %986
    %988 = vadd.xlane.f32.xlu0 %v985
    %v989 = vpop.xlane.xlu0 %988
    %v990 = vmax.f32 %v987, 1e-24
    %v991 = vmax.f32 %v989, 1e-24
    %v992 = vrsqrt.pop %v990
    %v993 = vrsqrt.pop %v991
    %v994 = vmul.f32 %v992, %v992
    %v995 = vmul.f32 %v993, %v993
    %v996 = vmul.f32 %v987, %v994
    %v997 = vmul.f32 %v989, %v995
    %v998 = vsel %vm616, %v996, 0.0
    %v999 = vsel %vm616, %v997, 0.0
    %v1000 = vadd.f32 %v998, %v999
    %1001 = vadd.xlane.f32.xlu0 %v1000
    %v1002 = vpop.xlane.xlu0 %1001
    %v1003 = vrot.slane %v1002, 4
    %v1004 = vadd.f32 %v1002, %v1003
    %v1005 = vrot.slane %v1004, 2
    %v1006 = vadd.f32 %v1004, %v1005
    %v1007 = vrot.slane %v1006, 1
    %v1008 = vadd.f32 %v1006, %v1007
    %s1009 = vtos %v1008
    %s1010 = smax.f32 %s1009, 1e-24
    %v1011 = vstv %s1010
    %v1012 = vrsqrt.pop %v1011
    %s1013 = vtos %v1012
    %v1014 = vstv %s1013
    %v1015 = vmul.f32 %v992, %v1014
    %v1016 = vmul.f32 %v993, %v1014
    %v1017 = vmul.f32 %v982, %v1015
    %v1018 = vmul.f32 %v983, %v1016
    %s1019 = scalar_lea.vmem [#allocation7], 32
    %1020 = vst [vmem:[%s1019] sm:$0xff] %v1017
    %1021 = vst [vmem:[%s1019 + $0x8] sm:$0xff] %v1018
    %1024 = vrot.lane.b32.xlu0 %v455, 64
    %v1025 = vpop.permute.xlu0 %1024
    %1026 = vrot.lane.b32.xlu0 %v458, 64
    %v1027 = vpop.permute.xlu0 %1026
    %v1030 = vsel %vm460, %v1025, 0.0
    %1031 = vadd.xlane.f32.xlu0 %v1030
    %v1032 = vpop.xlane.xlu0 %1031
    %v1033 = vsel %vm460, %v1027, 0.0
    %1034 = vadd.xlane.f32.xlu0 %v1033
    %v1035 = vpop.xlane.xlu0 %1034
    %1036 = vrot.lane.b32.xlu0 %v849, 64
    %v1037 = vpop.permute.xlu0 %1036
    %1038 = vrot.lane.b32.xlu0 %v850, 64
    %v1039 = vpop.permute.xlu0 %1038
    %1040 = vrot.lane.b32.xlu0 %v47, 64
    %v1041 = vpop.permute.xlu0 %1040
    %1042 = vrot.lane.b32.xlu0 %v50, 64
    %v1043 = vpop.permute.xlu0 %1042
    %1044 = vrot.lane.b32.xlu0 %v53, 64
    %v1045 = vpop.permute.xlu0 %1044
    %1046 = vrot.lane.b32.xlu0 %v56, 64
    %v1047 = vpop.permute.xlu0 %1046
    %1048 = vrot.lane.b32.xlu0 %v59, 64
    %v1049 = vpop.permute.xlu0 %1048
    %1050 = vrot.lane.b32.xlu0 %v62, 64
    %v1051 = vpop.permute.xlu0 %1050
    %1052 = vrot.lane.b32.xlu0 %v65, 64
    %v1053 = vpop.permute.xlu0 %1052
    %1054 = vrot.lane.b32.xlu0 %v68, 64
    %v1055 = vpop.permute.xlu0 %1054
    %1056 = vrot.lane.b32.xlu0 %v71, 64
    %v1057 = vpop.permute.xlu0 %1056
    %1058 = vrot.lane.b32.xlu0 %v74, 64
    %v1059 = vpop.permute.xlu0 %1058
    %1060 = vrot.lane.b32.xlu0 %v77, 64
    %v1061 = vpop.permute.xlu0 %1060
    %1062 = vrot.lane.b32.xlu0 %v80, 64
    %v1063 = vpop.permute.xlu0 %1062
    %1064 = vrot.lane.b32.xlu0 %v83, 64
    %v1065 = vpop.permute.xlu0 %1064
    %1066 = vrot.lane.b32.xlu0 %v86, 64
    %v1067 = vpop.permute.xlu0 %1066
    %1068 = vrot.lane.b32.xlu0 %v89, 64
    %v1069 = vpop.permute.xlu0 %1068
    %1070 = vrot.lane.b32.xlu0 %v92, 64
    %v1071 = vpop.permute.xlu0 %1070
    %v1072 = vsel %vm460, %v1037, 0
    %v1074 = vsel %vm460, %v1039, 0
    %v1076 = vsel %vm460, %v1041, 0
    %v1078 = vsel %vm460, %v1043, 0
    %v1080 = vsel %vm460, %v1045, 0
    %v1082 = vsel %vm460, %v1047, 0
    %v1084 = vsel %vm460, %v1049, 0
    %v1086 = vsel %vm460, %v1051, 0
    %v1088 = vsel %vm460, %v1053, 0
    %v1090 = vsel %vm460, %v1055, 0
    %v1092 = vsel %vm460, %v1057, 0
    %v1094 = vsel %vm460, %v1059, 0
    %v1096 = vsel %vm460, %v1061, 0
    %v1098 = vsel %vm460, %v1063, 0
    %v1100 = vsel %vm460, %v1065, 0
    %v1102 = vsel %vm460, %v1067, 0
    %v1104 = vsel %vm460, %v1069, 0
    %v1106 = vsel %vm460, %v1071, 0
    %1108 = vmatprep.subr.mxu0 0.0
    %1109 = vmatpush1.xpose.msra.mxu0 %v1106
    %1110 = vmatprep.subr.mxu0 0.0
    %1111 = vmatpush1.xpose.msra.mxu0 %v1104
    %1112 = vmatprep.subr.mxu0 0.0
    %1113 = vmatpush1.xpose.msra.mxu0 %v1102
    %1114 = vmatprep.subr.mxu0 0.0
    %1115 = vmatpush1.xpose.msra.mxu0 %v1100
    %1116 = vmatprep.subr.mxu0 0.0
    %1117 = vmatpush1.xpose.msra.mxu0 %v1098
    %1118 = vmatprep.subr.mxu0 0.0
    %1119 = vmatpush1.xpose.msra.mxu0 %v1096
    %1120 = vmatprep.subr.mxu0 0.0
    %1121 = vmatpush1.xpose.msra.mxu0 %v1094
    %1122 = vmatprep.subr.mxu0 0.0
    %1123 = vmatpush1.xpose.msra.mxu0 %v1092
    %1124 = vmatprep.subr.mxu0 0.0
    %1125 = vmatpush1.xpose.msra.mxu0 %v1090
    %1126 = vmatprep.subr.mxu0 0.0
    %1127 = vmatpush1.xpose.msra.mxu0 %v1088
    %1128 = vmatprep.subr.mxu0 0.0
    %1129 = vmatpush1.xpose.msra.mxu0 %v1086
    %1130 = vmatprep.subr.mxu0 0.0
    %1131 = vmatpush1.xpose.msra.mxu0 %v1084
    %1132 = vmatprep.subr.mxu0 0.0
    %1133 = vmatpush1.xpose.msra.mxu0 %v1082
    %1134 = vmatprep.subr.mxu0 0.0
    %1135 = vmatpush1.xpose.msra.mxu0 %v1080
    %1136 = vmatprep.subr.mxu0 0.0
    %1137 = vmatpush1.xpose.msra.mxu0 %v1078
    %1138 = vmatprep.subr.mxu0 0.0
    %1139 = vmatpush1.xpose.msra.mxu0 %v1076
    %1140 = vmatprep.subr.mxu0 0.0
    %1141 = vmatpush2.xpose.msra.mxu0 0.0
    %1142 = vmatprep.subr.mxu0 0.0
    %1143 = vmatpush2.xpose.msra.mxu0 0.0
    %1144 = vmatprep.subr.mxu0 0.0
    %1145 = vmatpush2.xpose.msra.mxu0 0.0
    %1146 = vmatprep.subr.mxu0 0.0
    %1147 = vmatpush2.xpose.msra.mxu0 0.0
    %1148 = vmatprep.subr.mxu0 0.0
    %1149 = vmatpush2.xpose.msra.mxu0 0.0
    %1150 = vmatprep.subr.mxu0 0.0
    %1151 = vmatpush2.xpose.msra.mxu0 0.0
    %1152 = vmatprep.subr.mxu0 0.0
    %1153 = vmatpush2.xpose.msra.mxu0 0.0
    %1154 = vmatprep.subr.mxu0 0.0
    %1155 = vmatpush2.xpose.msra.mxu0 0.0
    %1156 = vmatprep.subr.mxu0 0.0
    %1157 = vmatpush2.xpose.msra.mxu0 0.0
    %1158 = vmatprep.subr.mxu0 0.0
    %1159 = vmatpush2.xpose.msra.mxu0 0.0
    %1160 = vmatprep.subr.mxu0 0.0
    %1161 = vmatpush2.xpose.msra.mxu0 0.0
    %1162 = vmatprep.subr.mxu0 0.0
    %1163 = vmatpush2.xpose.msra.mxu0 0.0
    %1164 = vmatprep.subr.mxu0 0.0
    %1165 = vmatpush2.xpose.msra.mxu0 0.0
    %1166 = vmatprep.subr.mxu0 0.0
    %1167 = vmatpush2.xpose.msra.mxu0 0.0
    %1168 = vmatprep.subr.mxu0 0.0
    %1169 = vmatpush2.xpose.msra.mxu0 0.0
    %1170 = vmatprep.subr.mxu0 0.0
    %1171 = vmatpush2.xpose.msra.mxu0 0.0
    %1172 = vmatprep.mubr.f32.mxu0 0.0
    %1173 = vmatmul.mubr.f32.gmra.mxu0 %v1072
    %v1174 = vpop.f32.mrf.mxu0
    %v1175 = vadd.f32 0.0, %v1174
    %v1176 = vpop.f32.mrf.mxu0
    %1177 = vmatprep.mubr.f32.mxu0 0.0
    %1178 = vmatmul.mubr.f32.gmra.mxu0 %v1074
    %v1179 = vpop.f32.mrf.mxu0
    %v1180 = vadd.f32 0.0, %v1179
    %v1181 = vpop.f32.mrf.mxu0
    %1182 = vdwg.mxu0
    %v1183 = vmul.f32 %v98, %v1032
    %v1184 = vmul.f32 %v99, %v1035
    %v1185 = vsub.f32 %v1175, %v1183
    %v1186 = vsub.f32 %v1180, %v1184
    %v1187 = vmul.f32 %v1185, %v1185
    %v1188 = vmul.f32 %v1186, %v1186
    %1189 = vadd.xlane.f32.xlu0 %v1187
    %v1190 = vpop.xlane.xlu0 %1189
    %1191 = vadd.xlane.f32.xlu0 %v1188
    %v1192 = vpop.xlane.xlu0 %1191
    %v1193 = vmax.f32 %v1190, 1e-24
    %v1194 = vmax.f32 %v1192, 1e-24
    %v1195 = vrsqrt.pop %v1193
    %v1196 = vrsqrt.pop %v1194
    %v1197 = vmul.f32 %v1195, %v1195
    %v1198 = vmul.f32 %v1196, %v1196
    %v1199 = vmul.f32 %v1190, %v1197
    %v1200 = vmul.f32 %v1192, %v1198
    %v1201 = vsel %vm616, %v1199, 0.0
    %v1202 = vsel %vm616, %v1200, 0.0
    %v1203 = vadd.f32 %v1201, %v1202
    %1204 = vadd.xlane.f32.xlu0 %v1203
    %v1205 = vpop.xlane.xlu0 %1204
    %v1206 = vrot.slane %v1205, 4
    %v1207 = vadd.f32 %v1205, %v1206
    %v1208 = vrot.slane %v1207, 2
    %v1209 = vadd.f32 %v1207, %v1208
    %v1210 = vrot.slane %v1209, 1
    %v1211 = vadd.f32 %v1209, %v1210
    %s1212 = vtos %v1211
    %s1213 = smax.f32 %s1212, 1e-24
    %v1214 = vstv %s1213
    %v1215 = vrsqrt.pop %v1214
    %s1216 = vtos %v1215
    %v1217 = vstv %s1216
    %v1218 = vmul.f32 %v1195, %v1217
    %v1219 = vmul.f32 %v1196, %v1217
    %v1220 = vmul.f32 %v1185, %v1218
    %v1221 = vmul.f32 %v1186, %v1219
    %s1222 = scalar_lea.vmem [#allocation7], 48
    %1223 = vst [vmem:[%s1222] sm:$0xff] %v1220
    %1224 = vst [vmem:[%s1222 + $0x8] sm:$0xff] %v1221
    %v1225 = vsel %vm460, %v456, 0.0
    %1226 = vadd.xlane.f32.xlu0 %v1225
    %v1227 = vpop.xlane.xlu0 %1226
    %v1228 = vsel %vm460, %v459, 0.0
    %1229 = vadd.xlane.f32.xlu0 %v1228
    %v1230 = vpop.xlane.xlu0 %1229
    %v1231 = vmul.f32 %v456, %v216
    %v1232 = vmul.f32 %v459, %v216
    %v1234 = vsel %vm460, %v1231, 0
    %v1237 = vsel %vm460, %v1232, 0
    %v1240 = vsel %vm460, %v48, 0
    %v1243 = vsel %vm460, %v51, 0
    %v1246 = vsel %vm460, %v54, 0
    %v1249 = vsel %vm460, %v57, 0
    %v1252 = vsel %vm460, %v60, 0
    %v1255 = vsel %vm460, %v63, 0
    %v1258 = vsel %vm460, %v66, 0
    %v1261 = vsel %vm460, %v69, 0
    %v1264 = vsel %vm460, %v72, 0
    %v1267 = vsel %vm460, %v75, 0
    %v1270 = vsel %vm460, %v78, 0
    %v1273 = vsel %vm460, %v81, 0
    %v1276 = vsel %vm460, %v84, 0
    %v1279 = vsel %vm460, %v87, 0
    %v1282 = vsel %vm460, %v90, 0
    %v1285 = vsel %vm460, %v93, 0
    %1287 = vmatprep.subr.mxu0 0.0
    %1288 = vmatpush1.xpose.msra.mxu0 %v1285
    %1289 = vmatprep.subr.mxu0 0.0
    %1290 = vmatpush1.xpose.msra.mxu0 %v1282
    %1291 = vmatprep.subr.mxu0 0.0
    %1292 = vmatpush1.xpose.msra.mxu0 %v1279
    %1293 = vmatprep.subr.mxu0 0.0
    %1294 = vmatpush1.xpose.msra.mxu0 %v1276
    %1295 = vmatprep.subr.mxu0 0.0
    %1296 = vmatpush1.xpose.msra.mxu0 %v1273
    %1297 = vmatprep.subr.mxu0 0.0
    %1298 = vmatpush1.xpose.msra.mxu0 %v1270
    %1299 = vmatprep.subr.mxu0 0.0
    %1300 = vmatpush1.xpose.msra.mxu0 %v1267
    %1301 = vmatprep.subr.mxu0 0.0
    %1302 = vmatpush1.xpose.msra.mxu0 %v1264
    %1303 = vmatprep.subr.mxu0 0.0
    %1304 = vmatpush1.xpose.msra.mxu0 %v1261
    %1305 = vmatprep.subr.mxu0 0.0
    %1306 = vmatpush1.xpose.msra.mxu0 %v1258
    %1307 = vmatprep.subr.mxu0 0.0
    %1308 = vmatpush1.xpose.msra.mxu0 %v1255
    %1309 = vmatprep.subr.mxu0 0.0
    %1310 = vmatpush1.xpose.msra.mxu0 %v1252
    %1311 = vmatprep.subr.mxu0 0.0
    %1312 = vmatpush1.xpose.msra.mxu0 %v1249
    %1313 = vmatprep.subr.mxu0 0.0
    %1314 = vmatpush1.xpose.msra.mxu0 %v1246
    %1315 = vmatprep.subr.mxu0 0.0
    %1316 = vmatpush1.xpose.msra.mxu0 %v1243
    %1317 = vmatprep.subr.mxu0 0.0
    %1318 = vmatpush1.xpose.msra.mxu0 %v1240
    %1319 = vmatprep.subr.mxu0 0.0
    %1320 = vmatpush2.xpose.msra.mxu0 0.0
    %1321 = vmatprep.subr.mxu0 0.0
    %1322 = vmatpush2.xpose.msra.mxu0 0.0
    %1323 = vmatprep.subr.mxu0 0.0
    %1324 = vmatpush2.xpose.msra.mxu0 0.0
    %1325 = vmatprep.subr.mxu0 0.0
    %1326 = vmatpush2.xpose.msra.mxu0 0.0
    %1327 = vmatprep.subr.mxu0 0.0
    %1328 = vmatpush2.xpose.msra.mxu0 0.0
    %1329 = vmatprep.subr.mxu0 0.0
    %1330 = vmatpush2.xpose.msra.mxu0 0.0
    %1331 = vmatprep.subr.mxu0 0.0
    %1332 = vmatpush2.xpose.msra.mxu0 0.0
    %1333 = vmatprep.subr.mxu0 0.0
    %1334 = vmatpush2.xpose.msra.mxu0 0.0
    %1335 = vmatprep.subr.mxu0 0.0
    %1336 = vmatpush2.xpose.msra.mxu0 0.0
    %1337 = vmatprep.subr.mxu0 0.0
    %1338 = vmatpush2.xpose.msra.mxu0 0.0
    %1339 = vmatprep.subr.mxu0 0.0
    %1340 = vmatpush2.xpose.msra.mxu0 0.0
    %1341 = vmatprep.subr.mxu0 0.0
    %1342 = vmatpush2.xpose.msra.mxu0 0.0
    %1343 = vmatprep.subr.mxu0 0.0
    %1344 = vmatpush2.xpose.msra.mxu0 0.0
    %1345 = vmatprep.subr.mxu0 0.0
    %1346 = vmatpush2.xpose.msra.mxu0 0.0
    %1347 = vmatprep.subr.mxu0 0.0
    %1348 = vmatpush2.xpose.msra.mxu0 0.0
    %1349 = vmatprep.subr.mxu0 0.0
    %1350 = vmatpush2.xpose.msra.mxu0 0.0
    %1351 = vmatprep.mubr.f32.mxu0 0.0
    %1352 = vmatmul.mubr.f32.gmra.mxu0 %v1234
    %v1353 = vpop.f32.mrf.mxu0
    %v1354 = vadd.f32 0.0, %v1353
    %v1355 = vpop.f32.mrf.mxu0
    %1356 = vmatprep.mubr.f32.mxu0 0.0
    %1357 = vmatmul.mubr.f32.gmra.mxu0 %v1237
    %v1358 = vpop.f32.mrf.mxu0
    %v1359 = vadd.f32 0.0, %v1358
    %v1360 = vpop.f32.mrf.mxu0
    %1361 = vdwg.mxu0
    %v1362 = vmul.f32 %v98, %v1227
    %v1363 = vmul.f32 %v99, %v1230
    %v1364 = vsub.f32 %v1354, %v1362
    %v1365 = vsub.f32 %v1359, %v1363
    %v1366 = vmul.f32 %v1364, %v1364
    %v1367 = vmul.f32 %v1365, %v1365
    %1368 = vadd.xlane.f32.xlu0 %v1366
    %v1369 = vpop.xlane.xlu0 %1368
    %1370 = vadd.xlane.f32.xlu0 %v1367
    %v1371 = vpop.xlane.xlu0 %1370
    %v1372 = vmax.f32 %v1369, 1e-24
    %v1373 = vmax.f32 %v1371, 1e-24
    %v1374 = vrsqrt.pop %v1372
    %v1375 = vrsqrt.pop %v1373
    %v1376 = vmul.f32 %v1374, %v1374
    %v1377 = vmul.f32 %v1375, %v1375
    %v1378 = vmul.f32 %v1369, %v1376
    %v1379 = vmul.f32 %v1371, %v1377
    %v1380 = vsel %vm616, %v1378, 0.0
    %v1381 = vsel %vm616, %v1379, 0.0
    %v1382 = vadd.f32 %v1380, %v1381
    %1383 = vadd.xlane.f32.xlu0 %v1382
    %v1384 = vpop.xlane.xlu0 %1383
    %v1385 = vrot.slane %v1384, 4
    %v1386 = vadd.f32 %v1384, %v1385
    %v1387 = vrot.slane %v1386, 2
    %v1388 = vadd.f32 %v1386, %v1387
    %v1389 = vrot.slane %v1388, 1
    %v1390 = vadd.f32 %v1388, %v1389
    %s1391 = vtos %v1390
    %s1392 = smax.f32 %s1391, 1e-24
    %v1393 = vstv %s1392
    %v1394 = vrsqrt.pop %v1393
    %s1395 = vtos %v1394
    %v1396 = vstv %s1395
    %v1397 = vmul.f32 %v1374, %v1396
    %v1398 = vmul.f32 %v1375, %v1396
    %v1399 = vmul.f32 %v1364, %v1397
    %v1400 = vmul.f32 %v1365, %v1398
    %s1401 = scalar_lea.vmem [#allocation7], 64
    %1402 = vst [vmem:[%s1401] sm:$0xff] %v1399
    %1403 = vst [vmem:[%s1401 + $0x8] sm:$0xff] %v1400
    %1406 = vrot.lane.b32.xlu0 %v456, 64
    %v1407 = vpop.permute.xlu0 %1406
    %1408 = vrot.lane.b32.xlu0 %v459, 64
    %v1409 = vpop.permute.xlu0 %1408
    %v1412 = vsel %vm460, %v1407, 0.0
    %1413 = vadd.xlane.f32.xlu0 %v1412
    %v1414 = vpop.xlane.xlu0 %1413
    %v1415 = vsel %vm460, %v1409, 0.0
    %1416 = vadd.xlane.f32.xlu0 %v1415
    %v1417 = vpop.xlane.xlu0 %1416
    %1418 = vrot.lane.b32.xlu0 %v1231, 64
    %v1419 = vpop.permute.xlu0 %1418
    %1420 = vrot.lane.b32.xlu0 %v1232, 64
    %v1421 = vpop.permute.xlu0 %1420
    %1422 = vrot.lane.b32.xlu0 %v48, 64
    %v1423 = vpop.permute.xlu0 %1422
    %1424 = vrot.lane.b32.xlu0 %v51, 64
    %v1425 = vpop.permute.xlu0 %1424
    %1426 = vrot.lane.b32.xlu0 %v54, 64
    %v1427 = vpop.permute.xlu0 %1426
    %1428 = vrot.lane.b32.xlu0 %v57, 64
    %v1429 = vpop.permute.xlu0 %1428
    %1430 = vrot.lane.b32.xlu0 %v60, 64
    %v1431 = vpop.permute.xlu0 %1430
    %1432 = vrot.lane.b32.xlu0 %v63, 64
    %v1433 = vpop.permute.xlu0 %1432
    %1434 = vrot.lane.b32.xlu0 %v66, 64
    %v1435 = vpop.permute.xlu0 %1434
    %1436 = vrot.lane.b32.xlu0 %v69, 64
    %v1437 = vpop.permute.xlu0 %1436
    %1438 = vrot.lane.b32.xlu0 %v72, 64
    %v1439 = vpop.permute.xlu0 %1438
    %1440 = vrot.lane.b32.xlu0 %v75, 64
    %v1441 = vpop.permute.xlu0 %1440
    %1442 = vrot.lane.b32.xlu0 %v78, 64
    %v1443 = vpop.permute.xlu0 %1442
    %1444 = vrot.lane.b32.xlu0 %v81, 64
    %v1445 = vpop.permute.xlu0 %1444
    %1446 = vrot.lane.b32.xlu0 %v84, 64
    %v1447 = vpop.permute.xlu0 %1446
    %1448 = vrot.lane.b32.xlu0 %v87, 64
    %v1449 = vpop.permute.xlu0 %1448
    %1450 = vrot.lane.b32.xlu0 %v90, 64
    %v1451 = vpop.permute.xlu0 %1450
    %1452 = vrot.lane.b32.xlu0 %v93, 64
    %v1453 = vpop.permute.xlu0 %1452
    %v1454 = vsel %vm460, %v1419, 0
    %v1456 = vsel %vm460, %v1421, 0
    %v1458 = vsel %vm460, %v1423, 0
    %v1460 = vsel %vm460, %v1425, 0
    %v1462 = vsel %vm460, %v1427, 0
    %v1464 = vsel %vm460, %v1429, 0
    %v1466 = vsel %vm460, %v1431, 0
    %v1468 = vsel %vm460, %v1433, 0
    %v1470 = vsel %vm460, %v1435, 0
    %v1472 = vsel %vm460, %v1437, 0
    %v1474 = vsel %vm460, %v1439, 0
    %v1476 = vsel %vm460, %v1441, 0
    %v1478 = vsel %vm460, %v1443, 0
    %v1480 = vsel %vm460, %v1445, 0
    %v1482 = vsel %vm460, %v1447, 0
    %v1484 = vsel %vm460, %v1449, 0
    %v1486 = vsel %vm460, %v1451, 0
    %v1488 = vsel %vm460, %v1453, 0
    %1490 = vmatprep.subr.mxu0 0.0
    %1491 = vmatpush1.xpose.msra.mxu0 %v1488
    %1492 = vmatprep.subr.mxu0 0.0
    %1493 = vmatpush1.xpose.msra.mxu0 %v1486
    %1494 = vmatprep.subr.mxu0 0.0
    %1495 = vmatpush1.xpose.msra.mxu0 %v1484
    %1496 = vmatprep.subr.mxu0 0.0
    %1497 = vmatpush1.xpose.msra.mxu0 %v1482
    %1498 = vmatprep.subr.mxu0 0.0
    %1499 = vmatpush1.xpose.msra.mxu0 %v1480
    %1500 = vmatprep.subr.mxu0 0.0
    %1501 = vmatpush1.xpose.msra.mxu0 %v1478
    %1502 = vmatprep.subr.mxu0 0.0
    %1503 = vmatpush1.xpose.msra.mxu0 %v1476
    %1504 = vmatprep.subr.mxu0 0.0
    %1505 = vmatpush1.xpose.msra.mxu0 %v1474
    %1506 = vmatprep.subr.mxu0 0.0
    %1507 = vmatpush1.xpose.msra.mxu0 %v1472
    %1508 = vmatprep.subr.mxu0 0.0
    %1509 = vmatpush1.xpose.msra.mxu0 %v1470
    %1510 = vmatprep.subr.mxu0 0.0
    %1511 = vmatpush1.xpose.msra.mxu0 %v1468
    %1512 = vmatprep.subr.mxu0 0.0
    %1513 = vmatpush1.xpose.msra.mxu0 %v1466
    %1514 = vmatprep.subr.mxu0 0.0
    %1515 = vmatpush1.xpose.msra.mxu0 %v1464
    %1516 = vmatprep.subr.mxu0 0.0
    %1517 = vmatpush1.xpose.msra.mxu0 %v1462
    %1518 = vmatprep.subr.mxu0 0.0
    %1519 = vmatpush1.xpose.msra.mxu0 %v1460
    %1520 = vmatprep.subr.mxu0 0.0
    %1521 = vmatpush1.xpose.msra.mxu0 %v1458
    %1522 = vmatprep.subr.mxu0 0.0
    %1523 = vmatpush2.xpose.msra.mxu0 0.0
    %1524 = vmatprep.subr.mxu0 0.0
    %1525 = vmatpush2.xpose.msra.mxu0 0.0
    %1526 = vmatprep.subr.mxu0 0.0
    %1527 = vmatpush2.xpose.msra.mxu0 0.0
    %1528 = vmatprep.subr.mxu0 0.0
    %1529 = vmatpush2.xpose.msra.mxu0 0.0
    %1530 = vmatprep.subr.mxu0 0.0
    %1531 = vmatpush2.xpose.msra.mxu0 0.0
    %1532 = vmatprep.subr.mxu0 0.0
    %1533 = vmatpush2.xpose.msra.mxu0 0.0
    %1534 = vmatprep.subr.mxu0 0.0
    %1535 = vmatpush2.xpose.msra.mxu0 0.0
    %1536 = vmatprep.subr.mxu0 0.0
    %1537 = vmatpush2.xpose.msra.mxu0 0.0
    %1538 = vmatprep.subr.mxu0 0.0
    %1539 = vmatpush2.xpose.msra.mxu0 0.0
    %1540 = vmatprep.subr.mxu0 0.0
    %1541 = vmatpush2.xpose.msra.mxu0 0.0
    %1542 = vmatprep.subr.mxu0 0.0
    %1543 = vmatpush2.xpose.msra.mxu0 0.0
    %1544 = vmatprep.subr.mxu0 0.0
    %1545 = vmatpush2.xpose.msra.mxu0 0.0
    %1546 = vmatprep.subr.mxu0 0.0
    %1547 = vmatpush2.xpose.msra.mxu0 0.0
    %1548 = vmatprep.subr.mxu0 0.0
    %1549 = vmatpush2.xpose.msra.mxu0 0.0
    %1550 = vmatprep.subr.mxu0 0.0
    %1551 = vmatpush2.xpose.msra.mxu0 0.0
    %1552 = vmatprep.subr.mxu0 0.0
    %1553 = vmatpush2.xpose.msra.mxu0 0.0
    %1554 = vmatprep.mubr.f32.mxu0 0.0
    %1555 = vmatmul.mubr.f32.gmra.mxu0 %v1454
    %v1556 = vpop.f32.mrf.mxu0
    %v1557 = vadd.f32 0.0, %v1556
    %v1558 = vpop.f32.mrf.mxu0
    %1559 = vmatprep.mubr.f32.mxu0 0.0
    %1560 = vmatmul.mubr.f32.gmra.mxu0 %v1456
    %v1561 = vpop.f32.mrf.mxu0
    %v1562 = vadd.f32 0.0, %v1561
    %v1563 = vpop.f32.mrf.mxu0
    %1564 = vdwg.mxu0
    %v1565 = vmul.f32 %v98, %v1414
    %v1566 = vmul.f32 %v99, %v1417
    %v1567 = vsub.f32 %v1557, %v1565
    %v1568 = vsub.f32 %v1562, %v1566
    %v1569 = vmul.f32 %v1567, %v1567
    %v1570 = vmul.f32 %v1568, %v1568
    %1571 = vadd.xlane.f32.xlu0 %v1569
    %v1572 = vpop.xlane.xlu0 %1571
    %1573 = vadd.xlane.f32.xlu0 %v1570
    %v1574 = vpop.xlane.xlu0 %1573
    %v1575 = vmax.f32 %v1572, 1e-24
    %v1576 = vmax.f32 %v1574, 1e-24
    %v1577 = vrsqrt.pop %v1575
    %v1578 = vrsqrt.pop %v1576
    %v1579 = vmul.f32 %v1577, %v1577
    %v1580 = vmul.f32 %v1578, %v1578
    %v1581 = vmul.f32 %v1572, %v1579
    %v1582 = vmul.f32 %v1574, %v1580
    %v1583 = vsel %vm616, %v1581, 0.0
    %v1584 = vsel %vm616, %v1582, 0.0
    %v1585 = vadd.f32 %v1583, %v1584
    %1586 = vadd.xlane.f32.xlu0 %v1585
    %v1587 = vpop.xlane.xlu0 %1586
    %v1588 = vrot.slane %v1587, 4
    %v1589 = vadd.f32 %v1587, %v1588
    %v1590 = vrot.slane %v1589, 2
    %v1591 = vadd.f32 %v1589, %v1590
    %v1592 = vrot.slane %v1591, 1
    %v1593 = vadd.f32 %v1591, %v1592
    %s1594 = vtos %v1593
    %s1595 = smax.f32 %s1594, 1e-24
    %v1596 = vstv %s1595
    %v1597 = vrsqrt.pop %v1596
    %s1598 = vtos %v1597
    %v1599 = vstv %s1598
    %v1600 = vmul.f32 %v1577, %v1599
    %v1601 = vmul.f32 %v1578, %v1599
    %v1602 = vmul.f32 %v1567, %v1600
    %v1603 = vmul.f32 %v1568, %v1601
    %s1604 = scalar_lea.vmem [#allocation7], 80
    %1605 = vst [vmem:[%s1604] sm:$0xff] %v1602
    %1606 = vst [vmem:[%s1604 + $0x8] sm:$0xff] %v1603
    // Predicated region
    $region26: #{tpu_custom_call.1} parent=1 // pred_check
      _
    $region27: #{tpu_custom_call.1} parent=1 // pred_check_branch
      %1608 = sbr.rel (0) target = $region29
    $region28: #{tpu_custom_call.1} parent=1 // pred_region
      %s1610 = ssub.s32 1536, 1536
      %1611 = vsyncadd [#allocation4], %s1610
      %s1612 = sshll.u32 [#allocation7], 4
      %s1613 = int_to_ptr.vmem [resolvable:$true] %s1612
      %1618 = dma.vmem_to_hbm [thread:$0]  %s1613, 1536, %s4, [#allocation4], 128, 128, 8
    $region29: #{tpu_custom_call.1} parent=1 // pred_fallthru
      _
    // Predicated region
    $region30: #{tpu_custom_call.1} parent=1 // pred_check
      _
    $region31: #{tpu_custom_call.1} parent=1 // pred_check_branch
      %1620 = sbr.rel (0) target = $region33
    $region32: #{tpu_custom_call.1} parent=1 // pred_region
      %1621 = dma.done [#allocation4], 1536
    $region33: #{tpu_custom_call.1} parent=1 // pred_fallthru
      _
    %1622 = vsyncpa [#allocation3], 1
    %1623 = vsyncpa [#allocation6], 1
    %1624 = vsyncpa [#allocation4], 1

</llo_original>
